<compile_context>
chip_gen: v6e
topology: v6e:2x2x1
jax: 0.10.0
libtpu: 0.0.40
codegen_flags: <defaults>
</compile_context>

<pallas_src>
import math

import jax
import jax.numpy as jnp
import numpy as np
from jax.experimental import pallas as pl
from jax.experimental.pallas import tpu as pltpu


def mcgate_kernel(x_ref, ip_ref, w_ref, b_ref, op_ref, ones_ref, o_ref):
    """One grid step = one packed batch tile.

    x_ref    : (bt, K*D_in)   f32   inputs, K original batch rows packed per row
    ip_ref   : (bt, K*D_in)   f32   input prior, same packing
    w_ref    : (K*D_in, L)    bf16  block-diagonal weight, L = K*D_out (lane-dense)
    b_ref    : (1, L)         f32   bias tiled K times
    op_ref   : (bt, L)        f32   output prior, pre-shifted by its per-group max
    ones_ref : (L, L)         f32   block-diag ones: ones[a, b] = (a//C == b//C)
    o_ref    : (bt, L)        f32   output (lane-dense, unmasked stores)
    """
    # Elementwise input gating (VPU), then one fat MXU projection (bf16 in, f32 acc).
    xp = (x_ref[...] * ip_ref[...]).astype(w_ref.dtype)
    h = jnp.dot(xp, w_ref[...], preferred_element_type=jnp.float32) + b_ref[...]

    # activater := sigmoid, add the (pre-shifted) output prior.  op was shifted by
    # its per-group max in the wrapper, so z <= 1 and every group has an element
    # with z in (0, 1] -> exp is stable with no in-kernel max reduction at all.
    z = jax.nn.sigmoid(h) + op_ref[...]
    e = jnp.exp(z)

    # normaliser := softmax over contiguous groups of C lanes.  Per-group sum,
    # broadcast to every lane of its group, via one tiny MXU matmul against the
    # constant block-diagonal ones matrix -- no reshape / relayout needed.
    denom = jnp.dot(e, ones_ref[...], preferred_element_type=jnp.float32)
    o_ref[...] = (e * pl.reciprocal(denom, approx=True)).astype(o_ref.dtype)


def _pick_batch_tile(rows, row_bytes, budget_bytes=16 * 1024 * 1024):
    """Largest multiple-of-8 divisor of `rows` fitting the VMEM budget, preferring a
    grid of >= 2 steps (pipeline overlap; >= 2 steps per TensorCore on v7x)."""
    cap = max(8, min(rows, 1024, (budget_bytes // max(row_bytes, 1)) // 8 * 8))

    def largest_divisor(limit):
        limit -= limit % 8
        for bt in range(limit, 7, -8):
            if rows % bt == 0:
                return bt
        return 8  # rows is always a multiple of 8

    bt = largest_divisor(cap)
    if bt == rows and rows >= 16:
        bt = largest_divisor(rows // 2)
    return bt


def mcgate_forward(x, input_prior, output_prior, weight, bias, output_shape,
                   *, matmul_dtype=jnp.bfloat16):
    """Pallas-backed MCGate forward.

    x, input_prior : (B, D_in)
    output_prior   : (B, R, C)   with (R, C) == output_shape
    weight         : (R*C, D_in)
    bias           : (R*C,)
    returns        : (B, R, C)
    """
    B, D_in = x.shape
    R, C = output_shape
    D_out = R * C
    assert weight.shape == (D_out, D_in)
    assert bias.shape == (D_out,)
    assert output_prior.shape == (B, R, C)

    # ---------------- Layout plumbing (cheap, operand-sized XLA work) -------------
    # Lane-packing factor: collapse K batch rows into the lane dim so the packed
    # feature width L = K*D_out is a multiple of 128 (lane-dense loads/stores).
    k = 128 // math.gcd(D_out, 128)
    L = k * D_out
    kdin = k * D_in

    # Pad the batch to a multiple of 8*K: packed blocks stay (8, 128)-aligned and an
    # awkward B never forces one giant block (padded rows are discarded at the end).
    Bp = ((B + 8 * k - 1) // (8 * k)) * (8 * k)
    pad = Bp - B

    # Shift output_prior by its per-group max (softmax is shift-invariant per group):
    # removes the need for any in-kernel per-group max reduction.
    op_shifted = output_prior - jnp.max(output_prior, axis=-1, keepdims=True)
    op_flat = op_shifted.reshape(B, D_out)

    if pad:
        x_p = jnp.pad(x, ((0, pad), (0, 0)))
        ip_p = jnp.pad(input_prior, ((0, pad), (0, 0)))
        op_p = jnp.pad(op_flat, ((0, pad), (0, 0)))
    else:
        x_p, ip_p, op_p = x, input_prior, op_flat

    # Pack K rows into lanes (free row-major reshapes on contiguous arrays).
    rows = Bp // k
    x_s = x_p.reshape(rows, kdin)
    ip_s = ip_p.reshape(rows, kdin)
    op_s = op_p.reshape(rows, L)

    # Block-diagonal weight so the MXU emits the packed layout directly; bf16 per
    # perf review (f32 accumulation in-kernel).  Bias tiled to the packed width.
    w_t = jnp.transpose(weight, (1, 0))                                     # (D_in, D_out)
    w_bd = jnp.kron(jnp.eye(k, dtype=w_t.dtype), w_t).astype(matmul_dtype)  # (kdin, L)
    b_s = jnp.tile(bias, k).reshape(1, L).astype(jnp.float32)

    # Constant block-diagonal ones matrix for the in-kernel per-group softmax sum.
    # TODO(synk): for very large D_out, tile D_out (per-tile ones / weight blocks)
    # instead of keeping full (kdin, L) and (L, L) constants resident (v7x 64 MiB).
    gid = jnp.arange(L, dtype=jnp.int32) // C
    ones_bd = (gid[:, None] == gid[None, :]).astype(jnp.float32)            # (L, L)

    # ---------------- Tiling / VMEM budget -----------------------------------------
    row_bytes = 2 * 4 * (2 * kdin + 2 * L)          # double-buffered x/ip + op/out rows
    bt = _pick_batch_tile(rows, row_bytes)
    grid = (rows // bt,)

    const_bytes = (w_bd.size * w_bd.dtype.itemsize + b_s.size * 4 + ones_bd.size * 4)
    vmem_needed = 2 * const_bytes + bt * row_bytes
    vmem_limit = int(min(max(2 * vmem_needed, 32 * 1024 * 1024), 64 * 1024 * 1024))

    compiler_params = pltpu.CompilerParams(
        dimension_semantics=("parallel",),   # independent batch tiles (v7x 2-TC split)
        vmem_limit_bytes=vmem_limit)
    out_shape = jax.ShapeDtypeStruct((rows, L), x.dtype)

    def run(single_buffer_consts):
        # Grid-invariant operands: request a single pipeline buffer (halves their
        # resident VMEM) when supported.
        const_kw = dict(pipeline_mode=pl.Buffered(1)) if single_buffer_consts else {}
        in_specs = [
            pl.BlockSpec((bt, kdin), lambda i: (i, 0)),              # x tile
            pl.BlockSpec((bt, kdin), lambda i: (i, 0)),              # input_prior tile
            pl.BlockSpec((kdin, L), lambda i: (0, 0), **const_kw),   # weight (resident)
            pl.BlockSpec((1, L), lambda i: (0, 0), **const_kw),      # bias (resident)
            pl.BlockSpec((bt, L), lambda i: (i, 0)),                 # output_prior tile
            pl.BlockSpec((L, L), lambda i: (0, 0), **const_kw),      # ones (resident)
        ]
        return pl.pallas_call(
            mcgate_kernel,
            out_shape=out_shape,
            grid=grid,
            in_specs=in_specs,
            out_specs=pl.BlockSpec((bt, L), lambda i: (i, 0)),
            compiler_params=compiler_params,
        )(x_s, ip_s, w_bd, b_s, op_s, ones_bd)

    try:
        out_flat = run(single_buffer_consts=True)
    except Exception:
        # pl.Buffered(1) single-buffering is version-dependent; fall back to the
        # default double-buffered pipeline (correctness identical).
        out_flat = run(single_buffer_consts=False)

    # Free unpacking reshapes + drop batch padding.
    return out_flat.reshape(Bp, D_out)[:B].reshape(B, R, C)


def mcgate_reference(x, input_prior, output_prior, weight, bias, output_shape):
    """Pure-JAX reference mirroring the PyTorch forward (f32 end to end)."""
    B = x.shape[0]
    h = (x * input_prior) @ weight.T + bias
    h = h.reshape((B,) + tuple(output_shape))
    return jax.nn.softmax(jax.nn.sigmoid(h) + output_prior, axis=-1)


if __name__ == "__main__":
    # Small deterministic setup (B chosen so the packed grid has >= 2 steps).
    B, D_in = 64, 32
    output_shape = (4, 8)            # (R, C); output_dim = 32
    R, C = output_shape
    D_out = R * C

    key = jax.random.PRNGKey(0)
    k_w, k_b, k_x, k_ip, k_op = jax.random.split(key, 5)

    weight = jax.random.normal(k_w, (D_out, D_in), dtype=jnp.float32)
    bias = jax.random.normal(k_b, (D_out,), dtype=jnp.float32)

    x = jax.random.normal(k_x, (B, D_in), dtype=jnp.float32)
    input_prior = jax.random.uniform(k_ip, (B, D_in), dtype=jnp.float32)
    output_prior = jax.random.normal(k_op, (B, R, C), dtype=jnp.float32)

    out = mcgate_forward(x, input_prior, output_prior, weight, bias, output_shape)
    out = jax.block_until_ready(out)

    ref = mcgate_reference(x, input_prior, output_prior, weight, bias, output_shape)
    # bf16 MXU projection + approx EUP reciprocal => ~1e-3-level absolute error on
    # softmax outputs (values in [0, 1]); 1e-2 keeps > 2x margin.
    np.testing.assert_allclose(np.asarray(out), np.asarray(ref), rtol=1e-2, atol=1e-2)
    # Rows of each softmax group should (approximately) sum to 1.
    np.testing.assert_allclose(np.asarray(out.sum(axis=-1)), 1.0, rtol=0, atol=5e-3)

    print("KERNEL_OK")
</pallas_src>

<mosaic_0001>
module attributes {stable_mosaic.version = 11 : i64} {
  func.func @mcgate_kernel(%arg0: i32, %arg1: memref<8x128xf32, #tpu.memory_space<vmem>>, %arg2: memref<8x128xf32, #tpu.memory_space<vmem>>, %arg3: memref<128x128xbf16, #tpu.memory_space<vmem>>, %arg4: memref<1x128xf32, #tpu.memory_space<vmem>>, %arg5: memref<8x128xf32, #tpu.memory_space<vmem>>, %arg6: memref<128x128xf32, #tpu.memory_space<vmem>>, %arg7: memref<8x128xf32, #tpu.memory_space<vmem>>) attributes {dimension_semantics = [#tpu.dimension_semantics<parallel>], iteration_bounds = array<i64: 2>, scalar_prefetch = 0 : i64, scratch_operands = 0 : i64, tpu.core_type = #tpu.core_type<tc>, window_params = [{transform_indices = @transform_0, window_bounds = array<i64: 8, 128>}, {transform_indices = @transform_1, window_bounds = array<i64: 8, 128>}, {pipeline_mode = #tpu.pipeline_mode<synchronous>, transform_indices = @transform_2, window_bounds = array<i64: 128, 128>}, {pipeline_mode = #tpu.pipeline_mode<synchronous>, transform_indices = @transform_3, window_bounds = array<i64: 1, 128>}, {transform_indices = @transform_4, window_bounds = array<i64: 8, 128>}, {pipeline_mode = #tpu.pipeline_mode<synchronous>, transform_indices = @transform_5, window_bounds = array<i64: 128, 128>}, {transform_indices = @transform_6, window_bounds = array<i64: 8, 128>}]} {
    %c0 = arith.constant 0 : index
    %c0_0 = arith.constant 0 : index
    %0 = vector.load %arg1[%c0, %c0_0] : memref<8x128xf32, #tpu.memory_space<vmem>>, vector<8x128xf32>
    %c0_1 = arith.constant 0 : index
    %c0_2 = arith.constant 0 : index
    %1 = vector.load %arg2[%c0_1, %c0_2] : memref<8x128xf32, #tpu.memory_space<vmem>>, vector<8x128xf32>
    %2 = arith.mulf %0, %1 : vector<8x128xf32>
    %3 = arith.truncf %2 : vector<8x128xf32> to vector<8x128xbf16>
    %c0_3 = arith.constant 0 : index
    %c0_4 = arith.constant 0 : index
    %4 = vector.load %arg3[%c0_3, %c0_4] : memref<128x128xbf16, #tpu.memory_space<vmem>>, vector<128x128xbf16>
    %cst = arith.constant dense<0.000000e+00> : vector<8x128xf32>
    %5 = tpu.matmul %3, %4, %cst {dimension_numbers = #tpu.dot_dimension_numbers<[1], [0], [0], [1], [0, 0, 1, 1], [], []>} : vector<8x128xbf16>, vector<128x128xbf16>, vector<8x128xf32> -> vector<8x128xf32>
    %c0_5 = arith.constant 0 : index
    %c0_6 = arith.constant 0 : index
    %6 = vector.load %arg4[%c0_5, %c0_6] : memref<1x128xf32, #tpu.memory_space<vmem>>, vector<1x128xf32>
    %7 = vector.broadcast %6 : vector<1x128xf32> to vector<8x128xf32>
    %8 = arith.addf %5, %7 : vector<8x128xf32>
    %9 = arith.negf %8 : vector<8x128xf32>
    %10 = math.exp %9 : vector<8x128xf32>
    %cst_7 = arith.constant 1.000000e+00 : f32
    %11 = vector.broadcast %cst_7 : f32 to vector<8x128xf32>
    %12 = arith.addf %11, %10 : vector<8x128xf32>
    %13 = arith.divf %11, %12 : vector<8x128xf32>
    %c0_8 = arith.constant 0 : index
    %c0_9 = arith.constant 0 : index
    %14 = vector.load %arg5[%c0_8, %c0_9] : memref<8x128xf32, #tpu.memory_space<vmem>>, vector<8x128xf32>
    %15 = arith.addf %13, %14 : vector<8x128xf32>
    %16 = math.exp %15 : vector<8x128xf32>
    %c0_10 = arith.constant 0 : index
    %c0_11 = arith.constant 0 : index
    %17 = vector.load %arg6[%c0_10, %c0_11] : memref<128x128xf32, #tpu.memory_space<vmem>>, vector<128x128xf32>
    %cst_12 = arith.constant dense<0.000000e+00> : vector<8x128xf32>
    %18 = tpu.matmul %16, %17, %cst_12 {dimension_numbers = #tpu.dot_dimension_numbers<[1], [0], [0], [1], [0, 0, 1, 1], [], []>} : vector<8x128xf32>, vector<128x128xf32>, vector<8x128xf32> -> vector<8x128xf32>
    %19 = tpu.reciprocal %18 {approx = true} : vector<8x128xf32> -> vector<8x128xf32>
    %20 = arith.mulf %16, %19 : vector<8x128xf32>
    %c0_13 = arith.constant 0 : index
    %c0_14 = arith.constant 0 : index
    %21 = vector.load %arg7[%c0_13, %c0_14] : memref<8x128xf32, #tpu.memory_space<vmem>>, vector<8x128xf32>
    tpu.vector_store %arg7[%c0_13, %c0_14], %20 {strides = array<i32>} : memref<8x128xf32, #tpu.memory_space<vmem>>, vector<8x128xf32>,
    return
  }
  func.func @transform_0(%arg0: i32) -> (i32, i32) {
    %c0_i32 = arith.constant 0 : i32
    %c0_i32_0 = arith.constant 0 : i32
    return %arg0, %c0_i32 : i32, i32
  }
  func.func @transform_1(%arg0: i32) -> (i32, i32) {
    %c0_i32 = arith.constant 0 : i32
    %c0_i32_0 = arith.constant 0 : i32
    return %arg0, %c0_i32 : i32, i32
  }
  func.func @transform_2(%arg0: i32) -> (i32, i32) {
    %c0_i32 = arith.constant 0 : i32
    %c0_i32_0 = arith.constant 0 : i32
    %c0_i32_1 = arith.constant 0 : i32
    return %c0_i32, %c0_i32_0 : i32, i32
  }
  func.func @transform_3(%arg0: i32) -> (i32, i32) {
    %c0_i32 = arith.constant 0 : i32
    %c0_i32_0 = arith.constant 0 : i32
    %c0_i32_1 = arith.constant 0 : i32
    return %c0_i32, %c0_i32_0 : i32, i32
  }
  func.func @transform_4(%arg0: i32) -> (i32, i32) {
    %c0_i32 = arith.constant 0 : i32
    %c0_i32_0 = arith.constant 0 : i32
    return %arg0, %c0_i32 : i32, i32
  }
  func.func @transform_5(%arg0: i32) -> (i32, i32) {
    %c0_i32 = arith.constant 0 : i32
    %c0_i32_0 = arith.constant 0 : i32
    %c0_i32_1 = arith.constant 0 : i32
    return %c0_i32, %c0_i32_0 : i32, i32
  }
  func.func @transform_6(%arg0: i32) -> (i32, i32) {
    %c0_i32 = arith.constant 0 : i32
    %c0_i32_0 = arith.constant 0 : i32
    return %arg0, %c0_i32 : i32, i32
  }
}

module attributes {stable_mosaic.version = 11 : i64} {
  func.func @mcgate_kernel(%arg0: i32, %arg1: memref<8x128xf32, #tpu.memory_space<vmem>>, %arg2: memref<8x128xf32, #tpu.memory_space<vmem>>, %arg3: memref<128x128xbf16, #tpu.memory_space<vmem>>, %arg4: memref<1x128xf32, #tpu.memory_space<vmem>>, %arg5: memref<8x128xf32, #tpu.memory_space<vmem>>, %arg6: memref<128x128xf32, #tpu.memory_space<vmem>>, %arg7: memref<8x128xf32, #tpu.memory_space<vmem>>) attributes {dimension_semantics = [#tpu.dimension_semantics<parallel>], iteration_bounds = array<i64: 2>, scalar_prefetch = 0 : i64, scratch_operands = 0 : i64, tpu.core_type = #tpu.core_type<tc>, window_params = [{transform_indices = @transform_0, window_bounds = array<i64: 8, 128>}, {transform_indices = @transform_1, window_bounds = array<i64: 8, 128>}, {pipeline_mode = #tpu.pipeline_mode<synchronous>, transform_indices = @transform_2, window_bounds = array<i64: 128, 128>}, {pipeline_mode = #tpu.pipeline_mode<synchronous>, transform_indices = @transform_3, window_bounds = array<i64: 1, 128>}, {transform_indices = @transform_4, window_bounds = array<i64: 8, 128>}, {pipeline_mode = #tpu.pipeline_mode<synchronous>, transform_indices = @transform_5, window_bounds = array<i64: 128, 128>}, {transform_indices = @transform_6, window_bounds = array<i64: 8, 128>}]} {
    %c0 = arith.constant 0 : index
    %c0_0 = arith.constant 0 : index
    %0 = vector.load %arg1[%c0, %c0_0] : memref<8x128xf32, #tpu.memory_space<vmem>>, vector<8x128xf32>
    %c0_1 = arith.constant 0 : index
    %c0_2 = arith.constant 0 : index
    %1 = vector.load %arg2[%c0_1, %c0_2] : memref<8x128xf32, #tpu.memory_space<vmem>>, vector<8x128xf32>
    %2 = arith.mulf %0, %1 : vector<8x128xf32>
    %3 = arith.truncf %2 : vector<8x128xf32> to vector<8x128xbf16>
    %c0_3 = arith.constant 0 : index
    %c0_4 = arith.constant 0 : index
    %4 = vector.load %arg3[%c0_3, %c0_4] : memref<128x128xbf16, #tpu.memory_space<vmem>>, vector<128x128xbf16>
    %cst = arith.constant dense<0.000000e+00> : vector<8x128xf32>
    %5 = tpu.matmul %3, %4, %cst {dimension_numbers = #tpu.dot_dimension_numbers<[1], [0], [0], [1], [0, 0, 1, 1], [], []>} : vector<8x128xbf16>, vector<128x128xbf16>, vector<8x128xf32> -> vector<8x128xf32>
    %c0_5 = arith.constant 0 : index
    %c0_6 = arith.constant 0 : index
    %6 = vector.load %arg4[%c0_5, %c0_6] : memref<1x128xf32, #tpu.memory_space<vmem>>, vector<1x128xf32>
    %7 = vector.broadcast %6 : vector<1x128xf32> to vector<8x128xf32>
    %8 = arith.addf %5, %7 : vector<8x128xf32>
    %9 = arith.negf %8 : vector<8x128xf32>
    %10 = math.exp %9 : vector<8x128xf32>
    %cst_7 = arith.constant 1.000000e+00 : f32
    %11 = vector.broadcast %cst_7 : f32 to vector<8x128xf32>
    %12 = arith.addf %11, %10 : vector<8x128xf32>
    %13 = arith.divf %11, %12 : vector<8x128xf32>
    %c0_8 = arith.constant 0 : index
    %c0_9 = arith.constant 0 : index
    %14 = vector.load %arg5[%c0_8, %c0_9] : memref<8x128xf32, #tpu.memory_space<vmem>>, vector<8x128xf32>
    %15 = arith.addf %13, %14 : vector<8x128xf32>
    %16 = math.exp %15 : vector<8x128xf32>
    %c0_10 = arith.constant 0 : index
    %c0_11 = arith.constant 0 : index
    %17 = vector.load %arg6[%c0_10, %c0_11] : memref<128x128xf32, #tpu.memory_space<vmem>>, vector<128x128xf32>
    %cst_12 = arith.constant dense<0.000000e+00> : vector<8x128xf32>
    %18 = tpu.matmul %16, %17, %cst_12 {dimension_numbers = #tpu.dot_dimension_numbers<[1], [0], [0], [1], [0, 0, 1, 1], [], []>} : vector<8x128xf32>, vector<128x128xf32>, vector<8x128xf32> -> vector<8x128xf32>
    %19 = tpu.reciprocal %18 {approx = true} : vector<8x128xf32> -> vector<8x128xf32>
    %20 = arith.mulf %16, %19 : vector<8x128xf32>
    %c0_13 = arith.constant 0 : index
    %c0_14 = arith.constant 0 : index
    %21 = vector.load %arg7[%c0_13, %c0_14] : memref<8x128xf32, #tpu.memory_space<vmem>>, vector<8x128xf32>
    tpu.vector_store %arg7[%c0_13, %c0_14], %20 {strides = array<i32>} : memref<8x128xf32, #tpu.memory_space<vmem>>, vector<8x128xf32>,
    return
  }
  func.func @transform_0(%arg0: i32) -> (i32, i32) {
    %c0_i32 = arith.constant 0 : i32
    %c0_i32_0 = arith.constant 0 : i32
    return %arg0, %c0_i32 : i32, i32
  }
  func.func @transform_1(%arg0: i32) -> (i32, i32) {
    %c0_i32 = arith.constant 0 : i32
    %c0_i32_0 = arith.constant 0 : i32
    return %arg0, %c0_i32 : i32, i32
  }
  func.func @transform_2(%arg0: i32) -> (i32, i32) {
    %c0_i32 = arith.constant 0 : i32
    %c0_i32_0 = arith.constant 0 : i32
    %c0_i32_1 = arith.constant 0 : i32
    return %c0_i32, %c0_i32_0 : i32, i32
  }
  func.func @transform_3(%arg0: i32) -> (i32, i32) {
    %c0_i32 = arith.constant 0 : i32
    %c0_i32_0 = arith.constant 0 : i32
    %c0_i32_1 = arith.constant 0 : i32
    return %c0_i32, %c0_i32_0 : i32, i32
  }
  func.func @transform_4(%arg0: i32) -> (i32, i32) {
    %c0_i32 = arith.constant 0 : i32
    %c0_i32_0 = arith.constant 0 : i32
    return %arg0, %c0_i32 : i32, i32
  }
  func.func @transform_5(%arg0: i32) -> (i32, i32) {
    %c0_i32 = arith.constant 0 : i32
    %c0_i32_0 = arith.constant 0 : i32
    %c0_i32_1 = arith.constant 0 : i32
    return %c0_i32, %c0_i32_0 : i32, i32
  }
  func.func @transform_6(%arg0: i32) -> (i32, i32) {
    %c0_i32 = arith.constant 0 : i32
    %c0_i32_0 = arith.constant 0 : i32
    return %arg0, %c0_i32 : i32, i32
  }
}

</mosaic_0001>

<llo_original>
// kernel: tpu_custom_call.1
$region0: #{tpu_custom_call.1}
  #allocation0 [shape = 'u32[]', space=smem, size = 0x4, offset = 0x4, fixed_abs, tag = 'smem constant byte address 0x4 - core index']
  #allocation1 [shape = 'u32[144,128]{1,0:T(1,128)}', space=vmem, size = 0x12000, scoped, tag = 'internal scratch']
  %s0 = inlined_call_operand.hbm [shape: f32[16,128], index: 0, kind: input, shape index: {}]
  %s1 = inlined_call_operand.hbm [shape: f32[16,128], index: 1, kind: input, shape index: {}]
  %s2 = inlined_call_operand.hbm [shape: bf16[128,128], index: 2, kind: input, shape index: {}]
  %s3 = inlined_call_operand.vmem [shape: f32[1,128], index: 3, kind: input, shape index: {}]
  %s4 = inlined_call_operand.hbm [shape: f32[16,128], index: 4, kind: input, shape index: {}]
  %s5 = inlined_call_operand.hbm [shape: f32[128,128], index: 5, kind: input, shape index: {}]
  %s6 = inlined_call_operand.hbm [shape: f32[16,128], index: 6, kind: output, shape index: {}]
  %s7 = sld [smem:[#allocation0]]
  $region77: #{tpu_custom_call.1} parent=0
    _
  %s9 = ssub.s32 1, %s7
  %s10 = scalar_select 0, %s9, %s7
  $region1: #{tpu_custom_call.1} parent=0
    #allocation2 [shape = 'u8[8192]{0}', space=vmem, size = 0x2000, scoped, tag = 'input window, operand 0']
    #allocation3 [shape = 's32[2]{0}', space=sflag, size = 0x8, scoped, tag = 'scoped memory for tpu_custom_call.1']
    #allocation4 [shape = 's32[2]{0}', space=sflag, size = 0x8, scoped, tag = 'scoped memory for tpu_custom_call.1']
    #allocation5 [shape = 'u8[8192]{0}', space=vmem, size = 0x2000, scoped, tag = 'input window, operand 1']
    #allocation6 [shape = 's32[2]{0}', space=sflag, size = 0x8, scoped, tag = 'scoped memory for tpu_custom_call.1']
    #allocation7 [shape = 'u8[32768]{0}', space=vmem, size = 0x8000, scoped, tag = 'input window, operand 2, single buffered']
    #allocation8 [shape = 'u8[8192]{0}', space=vmem, size = 0x2000, scoped, tag = 'input window, operand 4']
    #allocation9 [shape = 's32[2]{0}', space=sflag, size = 0x8, scoped, tag = 'scoped memory for tpu_custom_call.1']
    #allocation10 [shape = 'u8[65536]{0}', space=vmem, size = 0x10000, scoped, tag = 'input window, operand 5, single buffered']
    #allocation11 [shape = 'u8[8192]{0}', space=vmem, size = 0x2000, scoped, tag = 'output window, operand 0']
    %11 = vsyncpa [#allocation3], 0
    %s12 = scalar_lea.sflag [#allocation3], 1
    %13 = vsyncpa %s12, 0
    %14 = vsyncpa [#allocation6], 0
    %s15 = scalar_lea.sflag [#allocation6], 1
    %16 = vsyncpa %s15, 0
    %17 = vsyncpa [#allocation9], 0
    %s18 = scalar_lea.sflag [#allocation9], 1
    %19 = vsyncpa %s18, 0
    %20 = vsyncpa [#allocation4], 0
    %s21 = scalar_lea.sflag [#allocation4], 1
    %22 = vsyncpa %s21, 0
    loop: start=0, step=1, limit=4
    $region2: #{tpu_custom_call.1} parent=1 // loop_pre_header
      _
    $region3: #{tpu_custom_call.1} parent=1 // loop_header
      %s24 = sphi 0, %s28
      %p25 = scmp.ge.s32.totalorder %s24, 4
      %s34 = sphi 0, %s36
      %s37 = sphi 0, %s34
      %s38 = sphi 0, %s37
      %s54 = sphi 0, %s38
      %s60 = sphi 0, %s62
      %s63 = sphi 0, %s60
      %s64 = sphi 0, %s63
      %s80 = sphi 0, %s64
      %s84 = sphi 0, %s84
      %s86 = sphi 0, %s84
      %s87 = sphi 0, %s86
      %s101 = sphi 0, %s87
      %s105 = sphi 0, %s105
      %s107 = sphi 0, %s105
      %s108 = sphi 0, %s107
      %s122 = sphi 0, %s108
      %s128 = sphi 0, %s130
      %s131 = sphi 0, %s128
      %s132 = sphi 0, %s131
      %s148 = sphi 0, %s132
      %s152 = sphi 0, %s152
      %s154 = sphi 0, %s152
      %s155 = sphi 0, %s154
      %s169 = sphi 0, %s155
      %s175 = sphi 0, %s177
      %s178 = sphi 0, %s175
      %s179 = sphi 0, %s178
      %s195 = sphi 0, %s179
    $region4: #{tpu_custom_call.1} parent=1 // loop_header_branch
      %27 = sbr.rel (%p25) target = $region8
    $region5: #{tpu_custom_call.1} parent=1 // loop_body
      %s29 = ssub.s32 %s24, 1
      %s30 = ssub.s32 %s24, 2
      %s31 = sadd.s32 %s24, 1
      %s32 = ssub.s32 %s24, %s31
      %p33 = scmp.eq.s32.totalorder %s32, 0
      %s35 = sadd.s32 %s34, 1
      %s36 = scalar_select %p33, %s34, %s35
      %p39 = pneg %p33
      %p40 = scmp.eq.s32.totalorder %s24, 1
      %p41 = por %p39, %p40
      %p42 = scmp.ne.s32.totalorder %s34, %s37
      %p43 = scmp.eq.s32.totalorder %s24, 0
      %p44 = por %p42, %p43
      %p45 = scmp.ne.s32.totalorder %s34, %s37
      %p46 = scmp.eq.s32.totalorder %s29, 1
      %p47 = por %p45, %p46
      %p48 = scmp.ne.s32.totalorder %s37, %s38
      %p49 = scmp.eq.s32.totalorder %s29, 0
      %p50 = por %p48, %p49
      %p51 = scmp.ne.s32.totalorder %s37, %s38
      %p52 = scmp.eq.s32.totalorder %s30, 1
      %p53 = por %p51, %p52
      %p55 = scmp.ne.s32.totalorder %s38, %s54
      %p56 = scmp.eq.s32.totalorder %s30, 0
      %p57 = por %p55, %p56
      %s58 = ssub.s32 %s24, %s31
      %p59 = scmp.eq.s32.totalorder %s58, 0
      %s61 = sadd.s32 %s60, 1
      %s62 = scalar_select %p59, %s60, %s61
      %p65 = pneg %p59
      %p66 = scmp.eq.s32.totalorder %s24, 1
      %p67 = por %p65, %p66
      %p68 = scmp.ne.s32.totalorder %s60, %s63
      %p69 = scmp.eq.s32.totalorder %s24, 0
      %p70 = por %p68, %p69
      %p71 = scmp.ne.s32.totalorder %s60, %s63
      %p72 = scmp.eq.s32.totalorder %s29, 1
      %p73 = por %p71, %p72
      %p74 = scmp.ne.s32.totalorder %s63, %s64
      %p75 = scmp.eq.s32.totalorder %s29, 0
      %p76 = por %p74, %p75
      %p77 = scmp.ne.s32.totalorder %s63, %s64
      %p78 = scmp.eq.s32.totalorder %s30, 1
      %p79 = por %p77, %p78
      %p81 = scmp.ne.s32.totalorder %s64, %s80
      %p82 = scmp.eq.s32.totalorder %s30, 0
      %p83 = por %p81, %p82
      %s85 = sadd.s32 %s84, 1
      %p88 = scmp.eq.s32.totalorder %s24, 1
      %p89 = scmp.ne.s32.totalorder %s84, %s86
      %p90 = scmp.eq.s32.totalorder %s24, 0
      %p91 = por %p89, %p90
      %p92 = scmp.ne.s32.totalorder %s84, %s86
      %p93 = scmp.eq.s32.totalorder %s29, 1
      %p94 = por %p92, %p93
      %p95 = scmp.ne.s32.totalorder %s86, %s87
      %p96 = scmp.eq.s32.totalorder %s29, 0
      %p97 = por %p95, %p96
      %p98 = scmp.ne.s32.totalorder %s86, %s87
      %p99 = scmp.eq.s32.totalorder %s30, 1
      %p100 = por %p98, %p99
      %p102 = scmp.ne.s32.totalorder %s87, %s101
      %p103 = scmp.eq.s32.totalorder %s30, 0
      %p104 = por %p102, %p103
      %s106 = sadd.s32 %s105, 1
      %p109 = scmp.eq.s32.totalorder %s24, 1
      %p110 = scmp.ne.s32.totalorder %s105, %s107
      %p111 = scmp.eq.s32.totalorder %s24, 0
      %p112 = por %p110, %p111
      %p113 = scmp.ne.s32.totalorder %s105, %s107
      %p114 = scmp.eq.s32.totalorder %s29, 1
      %p115 = por %p113, %p114
      %p116 = scmp.ne.s32.totalorder %s107, %s108
      %p117 = scmp.eq.s32.totalorder %s29, 0
      %p118 = por %p116, %p117
      %p119 = scmp.ne.s32.totalorder %s107, %s108
      %p120 = scmp.eq.s32.totalorder %s30, 1
      %p121 = por %p119, %p120
      %p123 = scmp.ne.s32.totalorder %s108, %s122
      %p124 = scmp.eq.s32.totalorder %s30, 0
      %p125 = por %p123, %p124
      %s126 = ssub.s32 %s24, %s31
      %p127 = scmp.eq.s32.totalorder %s126, 0
      %s129 = sadd.s32 %s128, 1
      %s130 = scalar_select %p127, %s128, %s129
      %p133 = pneg %p127
      %p134 = scmp.eq.s32.totalorder %s24, 1
      %p135 = por %p133, %p134
      %p136 = scmp.ne.s32.totalorder %s128, %s131
      %p137 = scmp.eq.s32.totalorder %s24, 0
      %p138 = por %p136, %p137
      %p139 = scmp.ne.s32.totalorder %s128, %s131
      %p140 = scmp.eq.s32.totalorder %s29, 1
      %p141 = por %p139, %p140
      %p142 = scmp.ne.s32.totalorder %s131, %s132
      %p143 = scmp.eq.s32.totalorder %s29, 0
      %p144 = por %p142, %p143
      %p145 = scmp.ne.s32.totalorder %s131, %s132
      %p146 = scmp.eq.s32.totalorder %s30, 1
      %p147 = por %p145, %p146
      %p149 = scmp.ne.s32.totalorder %s132, %s148
      %p150 = scmp.eq.s32.totalorder %s30, 0
      %p151 = por %p149, %p150
      %s153 = sadd.s32 %s152, 1
      %p156 = scmp.eq.s32.totalorder %s24, 1
      %p157 = scmp.ne.s32.totalorder %s152, %s154
      %p158 = scmp.eq.s32.totalorder %s24, 0
      %p159 = por %p157, %p158
      %p160 = scmp.ne.s32.totalorder %s152, %s154
      %p161 = scmp.eq.s32.totalorder %s29, 1
      %p162 = por %p160, %p161
      %p163 = scmp.ne.s32.totalorder %s154, %s155
      %p164 = scmp.eq.s32.totalorder %s29, 0
      %p165 = por %p163, %p164
      %p166 = scmp.ne.s32.totalorder %s154, %s155
      %p167 = scmp.eq.s32.totalorder %s30, 1
      %p168 = por %p166, %p167
      %p170 = scmp.ne.s32.totalorder %s155, %s169
      %p171 = scmp.eq.s32.totalorder %s30, 0
      %p172 = por %p170, %p171
      %s173 = ssub.s32 %s24, %s31
      %p174 = scmp.eq.s32.totalorder %s173, 0
      %s176 = sadd.s32 %s175, 1
      %s177 = scalar_select %p174, %s175, %s176
      %p180 = pneg %p174
      %p181 = scmp.eq.s32.totalorder %s24, 1
      %p182 = por %p180, %p181
      %p183 = scmp.ne.s32.totalorder %s175, %s178
      %p184 = scmp.eq.s32.totalorder %s24, 0
      %p185 = por %p183, %p184
      %p186 = scmp.ne.s32.totalorder %s175, %s178
      %p187 = scmp.eq.s32.totalorder %s29, 1
      %p188 = por %p186, %p187
      %p189 = scmp.ne.s32.totalorder %s178, %s179
      %p190 = scmp.eq.s32.totalorder %s29, 0
      %p191 = por %p189, %p190
      %p192 = scmp.ne.s32.totalorder %s178, %s179
      %p193 = scmp.eq.s32.totalorder %s30, 1
      %p194 = por %p192, %p193
      %p196 = scmp.ne.s32.totalorder %s179, %s195
      %p197 = scmp.eq.s32.totalorder %s30, 0
      %p198 = por %p196, %p197
      %p199 = scmp.le.s32.totalorder 1, %s24
      %p200 = scmp.lt.s32.totalorder %s24, 3
      %p201 = pnand %p199, %p200
      %p202 = pneg %p201
      // Predicated region
      $region9: #{tpu_custom_call.1} parent=5 // pred_check
        _
      $region10: #{tpu_custom_call.1} parent=5 // pred_check_branch
        %204 = sbr.rel (%p201) target = $region12
      $region11: #{tpu_custom_call.1} parent=5 // pred_region
        %s205 = ssub.s32 %s24, 1
        // Predicated region
        $region13: #{tpu_custom_call.1} parent=11 // pred_check
          %p206 = pneg %p97
        $region14: #{tpu_custom_call.1} parent=11 // pred_check_branch
          %208 = sbr.rel (%p206) target = $region16
        $region15: #{tpu_custom_call.1} parent=11 // pred_region
          %s210 = ssub.s32 1024, 1024
          %211 = vsyncadd [#allocation6], %s210
          %s212 = sshll.u32 [#allocation7], 4
          %s213 = int_to_ptr.vmem [resolvable:$true] %s212
          %218 = dma.hbm_to_vmem [thread:$0]  %s2, 1024, %s213, [#allocation6], 64, 64, 4
        $region16: #{tpu_custom_call.1} parent=11 // pred_fallthru
          _
        // Predicated region
        $region17: #{tpu_custom_call.1} parent=11 // pred_check
          %p219 = pneg %p118
        $region18: #{tpu_custom_call.1} parent=11 // pred_check_branch
          %221 = sbr.rel (%p219) target = $region20
        $region19: #{tpu_custom_call.1} parent=11 // pred_region
          _
        $region20: #{tpu_custom_call.1} parent=11 // pred_fallthru
          _
        // Predicated region
        $region21: #{tpu_custom_call.1} parent=11 // pred_check
          %p222 = pneg %p165
        $region22: #{tpu_custom_call.1} parent=11 // pred_check_branch
          %224 = sbr.rel (%p222) target = $region24
        $region23: #{tpu_custom_call.1} parent=11 // pred_region
          %s226 = ssub.s32 2048, 2048
          %227 = vsyncadd [#allocation9], %s226
          %s228 = sshll.u32 [#allocation10], 4
          %s229 = int_to_ptr.vmem [resolvable:$true] %s228
          %234 = dma.hbm_to_vmem [thread:$0]  %s5, 2048, %s229, [#allocation9], 128, 128, 8
        $region24: #{tpu_custom_call.1} parent=11 // pred_fallthru
          _
      $region12: #{tpu_custom_call.1} parent=5 // pred_fallthru
        _
      %p235 = scmp.lt.s32.totalorder %s24, 2
      // Predicated region
      $region25: #{tpu_custom_call.1} parent=5 // pred_check
        %p236 = pneg %p235
      $region26: #{tpu_custom_call.1} parent=5 // pred_check_branch
        %238 = sbr.rel (%p236) target = $region28
      $region27: #{tpu_custom_call.1} parent=5 // pred_region
        // Predicated region
        $region29: #{tpu_custom_call.1} parent=27 // pred_check
          %p239 = pneg %p44
        $region30: #{tpu_custom_call.1} parent=27 // pred_check_branch
          %241 = sbr.rel (%p239) target = $region32
        $region31: #{tpu_custom_call.1} parent=27 // pred_region
          %s242 = sand.u32 %s34, 1
          %s243 = scalar_lea.sflag [#allocation3], %s242
          %s244 = sand.u32 %s34, 1
          %s245 = smul.addr %s244, 8
          %s246 = scalar_lea.vmem [#allocation2], %s245
          %s248 = ssub.s32 128, 128
          %249 = vsyncadd %s243, %s248
          %s250 = smul.addr %s24, 128
          %s251 = scalar_lea.hbm %s0, %s250
          %s253 = sshll.u32 %s246, 4
          %s254 = int_to_ptr.vmem [resolvable:$true] %s253
          %256 = dma.hbm_to_vmem [thread:$0]  %s251, 128, %s254, %s243
        $region32: #{tpu_custom_call.1} parent=27 // pred_fallthru
          _
        // Predicated region
        $region33: #{tpu_custom_call.1} parent=27 // pred_check
          %p257 = pneg %p70
        $region34: #{tpu_custom_call.1} parent=27 // pred_check_branch
          %259 = sbr.rel (%p257) target = $region36
        $region35: #{tpu_custom_call.1} parent=27 // pred_region
          %s260 = sand.u32 %s24, 1
          %s261 = scalar_lea.sflag [#allocation6], %s260
          %s262 = sand.u32 %s60, 1
          %s263 = smul.addr %s262, 8
          %s264 = scalar_lea.vmem [#allocation5], %s263
          %s266 = ssub.s32 128, 128
          %267 = vsyncadd %s261, %s266
          %s268 = smul.addr %s24, 128
          %s269 = scalar_lea.hbm %s1, %s268
          %s271 = sshll.u32 %s264, 4
          %s272 = int_to_ptr.vmem [resolvable:$true] %s271
          %274 = dma.hbm_to_vmem [thread:$0]  %s269, 128, %s272, %s261
        $region36: #{tpu_custom_call.1} parent=27 // pred_fallthru
          _
        // Predicated region
        $region37: #{tpu_custom_call.1} parent=27 // pred_check
          %p275 = pneg %p138
        $region38: #{tpu_custom_call.1} parent=27 // pred_check_branch
          %277 = sbr.rel (%p275) target = $region40
        $region39: #{tpu_custom_call.1} parent=27 // pred_region
          %s278 = sand.u32 %s24, 1
          %s279 = scalar_lea.sflag [#allocation9], %s278
          %s280 = sand.u32 %s128, 1
          %s281 = smul.addr %s280, 8
          %s282 = scalar_lea.vmem [#allocation8], %s281
          %s284 = ssub.s32 128, 128
          %285 = vsyncadd %s279, %s284
          %s286 = smul.addr %s24, 128
          %s287 = scalar_lea.hbm %s4, %s286
          %s289 = sshll.u32 %s282, 4
          %s290 = int_to_ptr.vmem [resolvable:$true] %s289
          %292 = dma.hbm_to_vmem [thread:$0]  %s287, 128, %s290, %s279
        $region40: #{tpu_custom_call.1} parent=27 // pred_fallthru
          _
      $region28: #{tpu_custom_call.1} parent=5 // pred_fallthru
        _
      %p293 = scmp.le.s32.totalorder 1, %s24
      %p294 = scmp.lt.s32.totalorder %s24, 3
      %p295 = pnand %p293, %p294
      %p296 = pneg %p295
      // Predicated region
      $region41: #{tpu_custom_call.1} parent=5 // pred_check
        _
      $region42: #{tpu_custom_call.1} parent=5 // pred_check_branch
        %298 = sbr.rel (%p295) target = $region44
      $region43: #{tpu_custom_call.1} parent=5 // pred_region
        %s299 = ssub.s32 %s24, 1
        %s300 = sand.u32 %s37, 1
        %s301 = scalar_lea.sflag [#allocation3], %s300
        %s302 = sand.u32 %s37, 1
        %s303 = smul.addr %s302, 8
        %s304 = scalar_lea.vmem [#allocation2], %s303
        // Predicated region
        $region45: #{tpu_custom_call.1} parent=43 // pred_check
          %p305 = pneg %p50
        $region46: #{tpu_custom_call.1} parent=43 // pred_check_branch
          %307 = sbr.rel (%p305) target = $region48
        $region47: #{tpu_custom_call.1} parent=43 // pred_region
          %308 = dma.done %s301, 128
        $region48: #{tpu_custom_call.1} parent=43 // pred_fallthru
          _
        %s309 = sand.u32 %s29, 1
        %s310 = scalar_lea.sflag [#allocation6], %s309
        %s311 = sand.u32 %s63, 1
        %s312 = smul.addr %s311, 8
        %s313 = scalar_lea.vmem [#allocation5], %s312
        // Predicated region
        $region49: #{tpu_custom_call.1} parent=43 // pred_check
          %p314 = pneg %p76
        $region50: #{tpu_custom_call.1} parent=43 // pred_check_branch
          %316 = sbr.rel (%p314) target = $region52
        $region51: #{tpu_custom_call.1} parent=43 // pred_region
          %317 = dma.done %s310, 128
        $region52: #{tpu_custom_call.1} parent=43 // pred_fallthru
          _
        // Predicated region
        $region53: #{tpu_custom_call.1} parent=43 // pred_check
          %p318 = pneg %p97
        $region54: #{tpu_custom_call.1} parent=43 // pred_check_branch
          %320 = sbr.rel (%p318) target = $region56
        $region55: #{tpu_custom_call.1} parent=43 // pred_region
          %321 = dma.done [#allocation6], 1024
        $region56: #{tpu_custom_call.1} parent=43 // pred_fallthru
          _
        %s322 = sand.u32 %s29, 1
        %s323 = scalar_lea.sflag [#allocation9], %s322
        %s324 = sand.u32 %s131, 1
        %s325 = smul.addr %s324, 8
        %s326 = scalar_lea.vmem [#allocation8], %s325
        // Predicated region
        $region57: #{tpu_custom_call.1} parent=43 // pred_check
          %p327 = pneg %p144
        $region58: #{tpu_custom_call.1} parent=43 // pred_check_branch
          %329 = sbr.rel (%p327) target = $region60
        $region59: #{tpu_custom_call.1} parent=43 // pred_region
          %330 = dma.done %s323, 128
        $region60: #{tpu_custom_call.1} parent=43 // pred_fallthru
          _
        // Predicated region
        $region61: #{tpu_custom_call.1} parent=43 // pred_check
          %p331 = pneg %p165
        $region62: #{tpu_custom_call.1} parent=43 // pred_check_branch
          %333 = sbr.rel (%p331) target = $region64
        $region63: #{tpu_custom_call.1} parent=43 // pred_region
          %334 = dma.done [#allocation9], 2048
        $region64: #{tpu_custom_call.1} parent=43 // pred_fallthru
          _
        %s335 = sand.u32 %s37, 1
        %s336 = scalar_lea.sflag [#allocation3], %s335
        %s337 = sand.u32 %s37, 1
        %s338 = smul.addr %s337, 8
        %s339 = scalar_lea.vmem [#allocation2], %s338
        %p340 = pneg %p50
        %p341 = pneg %p47
        %s342 = sand.u32 %s29, 1
        %s343 = scalar_lea.sflag [#allocation6], %s342
        %s344 = sand.u32 %s63, 1
        %s345 = smul.addr %s344, 8
        %s346 = scalar_lea.vmem [#allocation5], %s345
        %p347 = pneg %p76
        %p348 = pneg %p73
        %p349 = pneg %p97
        %p350 = pneg %p94
        %p351 = pneg %p118
        %p352 = pneg %p115
        %s353 = sand.u32 %s29, 1
        %s354 = scalar_lea.sflag [#allocation9], %s353
        %s355 = sand.u32 %s131, 1
        %s356 = smul.addr %s355, 8
        %s357 = scalar_lea.vmem [#allocation8], %s356
        %p358 = pneg %p144
        %p359 = pneg %p141
        %p360 = pneg %p165
        %p361 = pneg %p162
        %p362 = pneg %p191
        %p363 = pneg %p188
        %s364 = sand.u32 %s178, 1
        %s365 = scalar_lea.sflag [#allocation4], %s364
        %s366 = sand.u32 %s178, 1
        %s367 = smul.addr %s366, 8
        %s368 = scalar_lea.vmem [#allocation11], %s367
        %v370 = vld [vmem:[%s304] sm:$0xff]
        %v371 = vld [vmem:[%s313] sm:$0xff]
        %v372 = vmul.f32 %v370, %v371
        %v373 = vpack.c.bf16 %v372, %v372
        %v374 = vld [vmem:[#allocation7] sm:$0xf]
        %v375 = vld [vmem:[#allocation7 + $0x4] sm:$0xf]
        %v376 = vld [vmem:[#allocation7 + $0x8] sm:$0xf]
        %v377 = vld [vmem:[#allocation7 + $0xc] sm:$0xf]
        %v378 = vld [vmem:[#allocation7 + $0x10] sm:$0xf]
        %v379 = vld [vmem:[#allocation7 + $0x14] sm:$0xf]
        %v380 = vld [vmem:[#allocation7 + $0x18] sm:$0xf]
        %v381 = vld [vmem:[#allocation7 + $0x1c] sm:$0xf]
        %v382 = vld [vmem:[#allocation7 + $0x20] sm:$0xf]
        %v383 = vld [vmem:[#allocation7 + $0x24] sm:$0xf]
        %v384 = vld [vmem:[#allocation7 + $0x28] sm:$0xf]
        %v385 = vld [vmem:[#allocation7 + $0x2c] sm:$0xf]
        %v386 = vld [vmem:[#allocation7 + $0x30] sm:$0xf]
        %v387 = vld [vmem:[#allocation7 + $0x34] sm:$0xf]
        %v388 = vld [vmem:[#allocation7 + $0x38] sm:$0xf]
        %v389 = vld [vmem:[#allocation7 + $0x3c] sm:$0xf]
        %v390 = vld [vmem:[%s3] sm:$0x1]
        %v392 = vlaneseq
        %v393 = vshrl.u32 %v392, 7
        %v394 = vsub.s32 0, %v393
        %v395 = vrot.slane %v390, %v394
        %v413 = vunpack.c.l.b16 %v374
        %v414 = vunpack.c.l.b16 %v375
        %v415 = vunpack.c.l.b16 %v376
        %v416 = vunpack.c.l.b16 %v377
        %v417 = vunpack.c.l.b16 %v378
        %v418 = vunpack.c.l.b16 %v379
        %v419 = vunpack.c.l.b16 %v380
        %v420 = vunpack.c.l.b16 %v381
        %v421 = vunpack.c.l.b16 %v382
        %v422 = vunpack.c.l.b16 %v383
        %v423 = vunpack.c.l.b16 %v384
        %v424 = vunpack.c.l.b16 %v385
        %v425 = vunpack.c.l.b16 %v386
        %v426 = vunpack.c.l.b16 %v387
        %v427 = vunpack.c.l.b16 %v388
        %v428 = vunpack.c.l.b16 %v389
        %v429 = vpack.c.b16 %v414, %v413
        %v430 = vpack.c.b16 %v416, %v415
        %v431 = vpack.c.b16 %v418, %v417
        %v432 = vpack.c.b16 %v420, %v419
        %v433 = vpack.c.b16 %v422, %v421
        %v434 = vpack.c.b16 %v424, %v423
        %v435 = vpack.c.b16 %v426, %v425
        %v436 = vpack.c.b16 %v428, %v427
        %445 = vmatprep.subr.bf16.mxu0 0
        %446 = vmatpush1.bf16.msra.mxu0 %v436
        %447 = vmatprep.subr.bf16.mxu0 0
        %448 = vmatpush1.bf16.msra.mxu0 %v435
        %449 = vmatprep.subr.bf16.mxu0 0
        %450 = vmatpush1.bf16.msra.mxu0 %v434
        %451 = vmatprep.subr.bf16.mxu0 0
        %452 = vmatpush1.bf16.msra.mxu0 %v433
        %453 = vmatprep.subr.bf16.mxu0 0
        %454 = vmatpush1.bf16.msra.mxu0 %v432
        %455 = vmatprep.subr.bf16.mxu0 0
        %456 = vmatpush1.bf16.msra.mxu0 %v431
        %457 = vmatprep.subr.bf16.mxu0 0
        %458 = vmatpush1.bf16.msra.mxu0 %v430
        %459 = vmatprep.subr.bf16.mxu0 0
        %460 = vmatpush1.bf16.msra.mxu0 %v429
        %461 = vmatprep.subr.bf16.mxu0 0
        %462 = vmatpush2.bf16.msra.mxu0 0
        %463 = vmatprep.subr.bf16.mxu0 0
        %464 = vmatpush2.bf16.msra.mxu0 0
        %465 = vmatprep.subr.bf16.mxu0 0
        %466 = vmatpush2.bf16.msra.mxu0 0
        %467 = vmatprep.subr.bf16.mxu0 0
        %468 = vmatpush2.bf16.msra.mxu0 0
        %469 = vmatprep.subr.bf16.mxu0 0
        %470 = vmatpush2.bf16.msra.mxu0 0
        %471 = vmatprep.subr.bf16.mxu0 0
        %472 = vmatpush2.bf16.msra.mxu0 0
        %473 = vmatprep.subr.bf16.mxu0 0
        %474 = vmatpush2.bf16.msra.mxu0 0
        %475 = vmatprep.subr.bf16.mxu0 0
        %476 = vmatpush2.bf16.msra.mxu0 0
        %477 = vmatprep.mubr.bf16.mxu0 0
        %478 = vmatmul.mubr.bf16.gmra.mxu0 %v373
        %v479 = vpop.f32.mrf.mxu0
        %v480 = vadd.f32 %v395, %v479
        %v481 = vpop.f32.mrf.mxu0
        %v482 = vpop.f32.mrf.mxu0
        %v483 = vpop.f32.mrf.mxu0
        %484 = vdwg.mxu0
        %v485 = vxor.u32 %v480, 2147483648
        %v486 = vmul.f32 %v485, 1.442695
        %v487 = vpow.pop %v486
        %v488 = vadd.f32 %v487, 1.0
        %v489 = vrcp.pop %v488
        %v490 = vmul.f32 1.0, %v489
        %v491 = vld [vmem:[%s326] sm:$0xff]
        %v492 = vadd.f32 %v490, %v491
        %v493 = vmul.f32 %v492, 1.442695
        %v494 = vpow.pop %v493
        %v495 = vld [vmem:[#allocation10] sm:$0xff]
        %v496 = vld [vmem:[#allocation10 + $0x8] sm:$0xff]
        %v497 = vld [vmem:[#allocation10 + $0x10] sm:$0xff]
        %v498 = vld [vmem:[#allocation10 + $0x18] sm:$0xff]
        %v499 = vld [vmem:[#allocation10 + $0x20] sm:$0xff]
        %v500 = vld [vmem:[#allocation10 + $0x28] sm:$0xff]
        %v501 = vld [vmem:[#allocation10 + $0x30] sm:$0xff]
        %v502 = vld [vmem:[#allocation10 + $0x38] sm:$0xff]
        %v503 = vld [vmem:[#allocation10 + $0x40] sm:$0xff]
        %v504 = vld [vmem:[#allocation10 + $0x48] sm:$0xff]
        %v505 = vld [vmem:[#allocation10 + $0x50] sm:$0xff]
        %v506 = vld [vmem:[#allocation10 + $0x58] sm:$0xff]
        %v507 = vld [vmem:[#allocation10 + $0x60] sm:$0xff]
        %v508 = vld [vmem:[#allocation10 + $0x68] sm:$0xff]
        %v509 = vld [vmem:[#allocation10 + $0x70] sm:$0xff]
        %v510 = vld [vmem:[#allocation10 + $0x78] sm:$0xff]
        %511 = vmatprep.subr.mxu0 0.0
        %512 = vmatpush1.msra.mxu0 %v510
        %513 = vmatprep.subr.mxu0 0.0
        %514 = vmatpush1.msra.mxu0 %v509
        %515 = vmatprep.subr.mxu0 0.0
        %516 = vmatpush1.msra.mxu0 %v508
        %517 = vmatprep.subr.mxu0 0.0
        %518 = vmatpush1.msra.mxu0 %v507
        %519 = vmatprep.subr.mxu0 0.0
        %520 = vmatpush1.msra.mxu0 %v506
        %521 = vmatprep.subr.mxu0 0.0
        %522 = vmatpush1.msra.mxu0 %v505
        %523 = vmatprep.subr.mxu0 0.0
        %524 = vmatpush1.msra.mxu0 %v504
        %525 = vmatprep.subr.mxu0 0.0
        %526 = vmatpush1.msra.mxu0 %v503
        %527 = vmatprep.subr.mxu0 0.0
        %528 = vmatpush1.msra.mxu0 %v502
        %529 = vmatprep.subr.mxu0 0.0
        %530 = vmatpush1.msra.mxu0 %v501
        %531 = vmatprep.subr.mxu0 0.0
        %532 = vmatpush1.msra.mxu0 %v500
        %533 = vmatprep.subr.mxu0 0.0
        %534 = vmatpush1.msra.mxu0 %v499
        %535 = vmatprep.subr.mxu0 0.0
        %536 = vmatpush1.msra.mxu0 %v498
        %537 = vmatprep.subr.mxu0 0.0
        %538 = vmatpush1.msra.mxu0 %v497
        %539 = vmatprep.subr.mxu0 0.0
        %540 = vmatpush1.msra.mxu0 %v496
        %541 = vmatprep.subr.mxu0 0.0
        %542 = vmatpush1.msra.mxu0 %v495
        %543 = vmatprep.subr.mxu0 0.0
        %544 = vmatpush2.msra.mxu0 0.0
        %545 = vmatprep.subr.mxu0 0.0
        %546 = vmatpush2.msra.mxu0 0.0
        %547 = vmatprep.subr.mxu0 0.0
        %548 = vmatpush2.msra.mxu0 0.0
        %549 = vmatprep.subr.mxu0 0.0
        %550 = vmatpush2.msra.mxu0 0.0
        %551 = vmatprep.subr.mxu0 0.0
        %552 = vmatpush2.msra.mxu0 0.0
        %553 = vmatprep.subr.mxu0 0.0
        %554 = vmatpush2.msra.mxu0 0.0
        %555 = vmatprep.subr.mxu0 0.0
        %556 = vmatpush2.msra.mxu0 0.0
        %557 = vmatprep.subr.mxu0 0.0
        %558 = vmatpush2.msra.mxu0 0.0
        %559 = vmatprep.subr.mxu0 0.0
        %560 = vmatpush2.msra.mxu0 0.0
        %561 = vmatprep.subr.mxu0 0.0
        %562 = vmatpush2.msra.mxu0 0.0
        %563 = vmatprep.subr.mxu0 0.0
        %564 = vmatpush2.msra.mxu0 0.0
        %565 = vmatprep.subr.mxu0 0.0
        %566 = vmatpush2.msra.mxu0 0.0
        %567 = vmatprep.subr.mxu0 0.0
        %568 = vmatpush2.msra.mxu0 0.0
        %569 = vmatprep.subr.mxu0 0.0
        %570 = vmatpush2.msra.mxu0 0.0
        %571 = vmatprep.subr.mxu0 0.0
        %572 = vmatpush2.msra.mxu0 0.0
        %573 = vmatprep.subr.mxu0 0.0
        %574 = vmatpush2.msra.mxu0 0.0
        %575 = vmatprep.mubr.f32.mxu0 0.0
        %576 = vmatmul.mubr.f32.gmra.mxu0 %v494
        %v577 = vpop.f32.mrf.mxu0
        %v578 = vadd.f32 0.0, %v577
        %v579 = vpop.f32.mrf.mxu0
        %580 = vdwg.mxu0
        %v581 = vrcp.pop %v578
        %v582 = vmul.f32 %v494, %v581
        %583 = vst [vmem:[%s368] sm:$0xff] %v582
        %s584 = sand.u32 %s178, 1
        %s585 = scalar_lea.sflag [#allocation4], %s584
        %s586 = sand.u32 %s178, 1
        %s587 = smul.addr %s586, 8
        %s588 = scalar_lea.vmem [#allocation11], %s587
        // Predicated region
        $region65: #{tpu_custom_call.1} parent=43 // pred_check
          %p589 = pneg %p188
        $region66: #{tpu_custom_call.1} parent=43 // pred_check_branch
          %591 = sbr.rel (%p589) target = $region68
        $region67: #{tpu_custom_call.1} parent=43 // pred_region
          %s593 = ssub.s32 128, 128
          %594 = vsyncadd %s585, %s593
          %s595 = smul.addr %s29, 128
          %s596 = scalar_lea.hbm %s6, %s595
          %s598 = sshll.u32 %s588, 4
          %s599 = int_to_ptr.vmem [resolvable:$true] %s598
          %601 = dma.vmem_to_hbm [thread:$0]  %s599, 128, %s596, %s585
        $region68: #{tpu_custom_call.1} parent=43 // pred_fallthru
          _
      $region44: #{tpu_custom_call.1} parent=5 // pred_fallthru
        _
      %p602 = scmp.le.s32.totalorder 2, %s24
      // Predicated region
      $region69: #{tpu_custom_call.1} parent=5 // pred_check
        %p603 = pneg %p602
      $region70: #{tpu_custom_call.1} parent=5 // pred_check_branch
        %605 = sbr.rel (%p603) target = $region72
      $region71: #{tpu_custom_call.1} parent=5 // pred_region
        %s606 = ssub.s32 %s24, 2
        // Predicated region
        $region73: #{tpu_custom_call.1} parent=71 // pred_check
          %p607 = pneg %p194
        $region74: #{tpu_custom_call.1} parent=71 // pred_check_branch
          %609 = sbr.rel (%p607) target = $region76
        $region75: #{tpu_custom_call.1} parent=71 // pred_region
          %s610 = sand.u32 %s179, 1
          %s611 = scalar_lea.sflag [#allocation4], %s610
          %s612 = sand.u32 %s179, 1
          %s613 = smul.addr %s612, 8
          %s614 = scalar_lea.vmem [#allocation11], %s613
          %615 = dma.done %s611, 128
        $region76: #{tpu_custom_call.1} parent=71 // pred_fallthru
          _
      $region72: #{tpu_custom_call.1} parent=5 // pred_fallthru
        _
    $region6: #{tpu_custom_call.1} parent=1 // loop_footer
      %s28 = sadd.s32 1, %s24
    $region7: #{tpu_custom_call.1} parent=1 // loop_footer_branch
      %23 = sbr.rel target = $region3
    $region8: #{tpu_custom_call.1} parent=1 // loop_exit
      _
    %616 = vsyncpa [#allocation3], 1
    %s617 = scalar_lea.sflag [#allocation3], 1
    %618 = vsyncpa %s617, 1
    %619 = vsyncpa [#allocation6], 1
    %s620 = scalar_lea.sflag [#allocation6], 1
    %621 = vsyncpa %s620, 1
    %622 = vsyncpa [#allocation9], 1
    %s623 = scalar_lea.sflag [#allocation9], 1
    %624 = vsyncpa %s623, 1
    %625 = vsyncpa [#allocation4], 1
    %s626 = scalar_lea.sflag [#allocation4], 1
    %627 = vsyncpa %s626, 1

// kernel: tpu_custom_call.1
$region0: #{tpu_custom_call.1}
  #allocation0 [shape = 'u32[]', space=smem, size = 0x4, offset = 0x4, fixed_abs, tag = 'smem constant byte address 0x4 - core index']
  #allocation1 [shape = 'u32[144,128]{1,0:T(1,128)}', space=vmem, size = 0x12000, scoped, tag = 'internal scratch']
  %s0 = inlined_call_operand.hbm [shape: f32[16,128], index: 0, kind: input, shape index: {}]
  %s1 = inlined_call_operand.hbm [shape: f32[16,128], index: 1, kind: input, shape index: {}]
  %s2 = inlined_call_operand.hbm [shape: bf16[128,128], index: 2, kind: input, shape index: {}]
  %s3 = inlined_call_operand.vmem [shape: f32[1,128], index: 3, kind: input, shape index: {}]
  %s4 = inlined_call_operand.hbm [shape: f32[16,128], index: 4, kind: input, shape index: {}]
  %s5 = inlined_call_operand.hbm [shape: f32[128,128], index: 5, kind: input, shape index: {}]
  %s6 = inlined_call_operand.hbm [shape: f32[16,128], index: 6, kind: output, shape index: {}]
  %s7 = sld [smem:[#allocation0]]
  $region77: #{tpu_custom_call.1} parent=0
    _
  %s9 = ssub.s32 1, %s7
  %s10 = scalar_select 0, %s9, %s7
  $region1: #{tpu_custom_call.1} parent=0
    #allocation2 [shape = 'u8[8192]{0}', space=vmem, size = 0x2000, scoped, tag = 'input window, operand 0']
    #allocation3 [shape = 's32[2]{0}', space=sflag, size = 0x8, scoped, tag = 'scoped memory for tpu_custom_call.1']
    #allocation4 [shape = 's32[2]{0}', space=sflag, size = 0x8, scoped, tag = 'scoped memory for tpu_custom_call.1']
    #allocation5 [shape = 'u8[8192]{0}', space=vmem, size = 0x2000, scoped, tag = 'input window, operand 1']
    #allocation6 [shape = 's32[2]{0}', space=sflag, size = 0x8, scoped, tag = 'scoped memory for tpu_custom_call.1']
    #allocation7 [shape = 'u8[32768]{0}', space=vmem, size = 0x8000, scoped, tag = 'input window, operand 2, single buffered']
    #allocation8 [shape = 'u8[8192]{0}', space=vmem, size = 0x2000, scoped, tag = 'input window, operand 4']
    #allocation9 [shape = 's32[2]{0}', space=sflag, size = 0x8, scoped, tag = 'scoped memory for tpu_custom_call.1']
    #allocation10 [shape = 'u8[65536]{0}', space=vmem, size = 0x10000, scoped, tag = 'input window, operand 5, single buffered']
    #allocation11 [shape = 'u8[8192]{0}', space=vmem, size = 0x2000, scoped, tag = 'output window, operand 0']
    %11 = vsyncpa [#allocation3], 0
    %s12 = scalar_lea.sflag [#allocation3], 1
    %13 = vsyncpa %s12, 0
    %14 = vsyncpa [#allocation6], 0
    %s15 = scalar_lea.sflag [#allocation6], 1
    %16 = vsyncpa %s15, 0
    %17 = vsyncpa [#allocation9], 0
    %s18 = scalar_lea.sflag [#allocation9], 1
    %19 = vsyncpa %s18, 0
    %20 = vsyncpa [#allocation4], 0
    %s21 = scalar_lea.sflag [#allocation4], 1
    %22 = vsyncpa %s21, 0
    loop: start=0, step=1, limit=4
    $region2: #{tpu_custom_call.1} parent=1 // loop_pre_header
      _
    $region3: #{tpu_custom_call.1} parent=1 // loop_header
      %s24 = sphi 0, %s28
      %p25 = scmp.ge.s32.totalorder %s24, 4
      %s34 = sphi 0, %s36
      %s37 = sphi 0, %s34
      %s38 = sphi 0, %s37
      %s54 = sphi 0, %s38
      %s60 = sphi 0, %s62
      %s63 = sphi 0, %s60
      %s64 = sphi 0, %s63
      %s80 = sphi 0, %s64
      %s84 = sphi 0, %s84
      %s86 = sphi 0, %s84
      %s87 = sphi 0, %s86
      %s101 = sphi 0, %s87
      %s105 = sphi 0, %s105
      %s107 = sphi 0, %s105
      %s108 = sphi 0, %s107
      %s122 = sphi 0, %s108
      %s128 = sphi 0, %s130
      %s131 = sphi 0, %s128
      %s132 = sphi 0, %s131
      %s148 = sphi 0, %s132
      %s152 = sphi 0, %s152
      %s154 = sphi 0, %s152
      %s155 = sphi 0, %s154
      %s169 = sphi 0, %s155
      %s175 = sphi 0, %s177
      %s178 = sphi 0, %s175
      %s179 = sphi 0, %s178
      %s195 = sphi 0, %s179
    $region4: #{tpu_custom_call.1} parent=1 // loop_header_branch
      %27 = sbr.rel (%p25) target = $region8
    $region5: #{tpu_custom_call.1} parent=1 // loop_body
      %s29 = ssub.s32 %s24, 1
      %s30 = ssub.s32 %s24, 2
      %s31 = sadd.s32 %s24, 1
      %s32 = ssub.s32 %s24, %s31
      %p33 = scmp.eq.s32.totalorder %s32, 0
      %s35 = sadd.s32 %s34, 1
      %s36 = scalar_select %p33, %s34, %s35
      %p39 = pneg %p33
      %p40 = scmp.eq.s32.totalorder %s24, 1
      %p41 = por %p39, %p40
      %p42 = scmp.ne.s32.totalorder %s34, %s37
      %p43 = scmp.eq.s32.totalorder %s24, 0
      %p44 = por %p42, %p43
      %p45 = scmp.ne.s32.totalorder %s34, %s37
      %p46 = scmp.eq.s32.totalorder %s29, 1
      %p47 = por %p45, %p46
      %p48 = scmp.ne.s32.totalorder %s37, %s38
      %p49 = scmp.eq.s32.totalorder %s29, 0
      %p50 = por %p48, %p49
      %p51 = scmp.ne.s32.totalorder %s37, %s38
      %p52 = scmp.eq.s32.totalorder %s30, 1
      %p53 = por %p51, %p52
      %p55 = scmp.ne.s32.totalorder %s38, %s54
      %p56 = scmp.eq.s32.totalorder %s30, 0
      %p57 = por %p55, %p56
      %s58 = ssub.s32 %s24, %s31
      %p59 = scmp.eq.s32.totalorder %s58, 0
      %s61 = sadd.s32 %s60, 1
      %s62 = scalar_select %p59, %s60, %s61
      %p65 = pneg %p59
      %p66 = scmp.eq.s32.totalorder %s24, 1
      %p67 = por %p65, %p66
      %p68 = scmp.ne.s32.totalorder %s60, %s63
      %p69 = scmp.eq.s32.totalorder %s24, 0
      %p70 = por %p68, %p69
      %p71 = scmp.ne.s32.totalorder %s60, %s63
      %p72 = scmp.eq.s32.totalorder %s29, 1
      %p73 = por %p71, %p72
      %p74 = scmp.ne.s32.totalorder %s63, %s64
      %p75 = scmp.eq.s32.totalorder %s29, 0
      %p76 = por %p74, %p75
      %p77 = scmp.ne.s32.totalorder %s63, %s64
      %p78 = scmp.eq.s32.totalorder %s30, 1
      %p79 = por %p77, %p78
      %p81 = scmp.ne.s32.totalorder %s64, %s80
      %p82 = scmp.eq.s32.totalorder %s30, 0
      %p83 = por %p81, %p82
      %s85 = sadd.s32 %s84, 1
      %p88 = scmp.eq.s32.totalorder %s24, 1
      %p89 = scmp.ne.s32.totalorder %s84, %s86
      %p90 = scmp.eq.s32.totalorder %s24, 0
      %p91 = por %p89, %p90
      %p92 = scmp.ne.s32.totalorder %s84, %s86
      %p93 = scmp.eq.s32.totalorder %s29, 1
      %p94 = por %p92, %p93
      %p95 = scmp.ne.s32.totalorder %s86, %s87
      %p96 = scmp.eq.s32.totalorder %s29, 0
      %p97 = por %p95, %p96
      %p98 = scmp.ne.s32.totalorder %s86, %s87
      %p99 = scmp.eq.s32.totalorder %s30, 1
      %p100 = por %p98, %p99
      %p102 = scmp.ne.s32.totalorder %s87, %s101
      %p103 = scmp.eq.s32.totalorder %s30, 0
      %p104 = por %p102, %p103
      %s106 = sadd.s32 %s105, 1
      %p109 = scmp.eq.s32.totalorder %s24, 1
      %p110 = scmp.ne.s32.totalorder %s105, %s107
      %p111 = scmp.eq.s32.totalorder %s24, 0
      %p112 = por %p110, %p111
      %p113 = scmp.ne.s32.totalorder %s105, %s107
      %p114 = scmp.eq.s32.totalorder %s29, 1
      %p115 = por %p113, %p114
      %p116 = scmp.ne.s32.totalorder %s107, %s108
      %p117 = scmp.eq.s32.totalorder %s29, 0
      %p118 = por %p116, %p117
      %p119 = scmp.ne.s32.totalorder %s107, %s108
      %p120 = scmp.eq.s32.totalorder %s30, 1
      %p121 = por %p119, %p120
      %p123 = scmp.ne.s32.totalorder %s108, %s122
      %p124 = scmp.eq.s32.totalorder %s30, 0
      %p125 = por %p123, %p124
      %s126 = ssub.s32 %s24, %s31
      %p127 = scmp.eq.s32.totalorder %s126, 0
      %s129 = sadd.s32 %s128, 1
      %s130 = scalar_select %p127, %s128, %s129
      %p133 = pneg %p127
      %p134 = scmp.eq.s32.totalorder %s24, 1
      %p135 = por %p133, %p134
      %p136 = scmp.ne.s32.totalorder %s128, %s131
      %p137 = scmp.eq.s32.totalorder %s24, 0
      %p138 = por %p136, %p137
      %p139 = scmp.ne.s32.totalorder %s128, %s131
      %p140 = scmp.eq.s32.totalorder %s29, 1
      %p141 = por %p139, %p140
      %p142 = scmp.ne.s32.totalorder %s131, %s132
      %p143 = scmp.eq.s32.totalorder %s29, 0
      %p144 = por %p142, %p143
      %p145 = scmp.ne.s32.totalorder %s131, %s132
      %p146 = scmp.eq.s32.totalorder %s30, 1
      %p147 = por %p145, %p146
      %p149 = scmp.ne.s32.totalorder %s132, %s148
      %p150 = scmp.eq.s32.totalorder %s30, 0
      %p151 = por %p149, %p150
      %s153 = sadd.s32 %s152, 1
      %p156 = scmp.eq.s32.totalorder %s24, 1
      %p157 = scmp.ne.s32.totalorder %s152, %s154
      %p158 = scmp.eq.s32.totalorder %s24, 0
      %p159 = por %p157, %p158
      %p160 = scmp.ne.s32.totalorder %s152, %s154
      %p161 = scmp.eq.s32.totalorder %s29, 1
      %p162 = por %p160, %p161
      %p163 = scmp.ne.s32.totalorder %s154, %s155
      %p164 = scmp.eq.s32.totalorder %s29, 0
      %p165 = por %p163, %p164
      %p166 = scmp.ne.s32.totalorder %s154, %s155
      %p167 = scmp.eq.s32.totalorder %s30, 1
      %p168 = por %p166, %p167
      %p170 = scmp.ne.s32.totalorder %s155, %s169
      %p171 = scmp.eq.s32.totalorder %s30, 0
      %p172 = por %p170, %p171
      %s173 = ssub.s32 %s24, %s31
      %p174 = scmp.eq.s32.totalorder %s173, 0
      %s176 = sadd.s32 %s175, 1
      %s177 = scalar_select %p174, %s175, %s176
      %p180 = pneg %p174
      %p181 = scmp.eq.s32.totalorder %s24, 1
      %p182 = por %p180, %p181
      %p183 = scmp.ne.s32.totalorder %s175, %s178
      %p184 = scmp.eq.s32.totalorder %s24, 0
      %p185 = por %p183, %p184
      %p186 = scmp.ne.s32.totalorder %s175, %s178
      %p187 = scmp.eq.s32.totalorder %s29, 1
      %p188 = por %p186, %p187
      %p189 = scmp.ne.s32.totalorder %s178, %s179
      %p190 = scmp.eq.s32.totalorder %s29, 0
      %p191 = por %p189, %p190
      %p192 = scmp.ne.s32.totalorder %s178, %s179
      %p193 = scmp.eq.s32.totalorder %s30, 1
      %p194 = por %p192, %p193
      %p196 = scmp.ne.s32.totalorder %s179, %s195
      %p197 = scmp.eq.s32.totalorder %s30, 0
      %p198 = por %p196, %p197
      %p199 = scmp.le.s32.totalorder 1, %s24
      %p200 = scmp.lt.s32.totalorder %s24, 3
      %p201 = pnand %p199, %p200
      %p202 = pneg %p201
      // Predicated region
      $region9: #{tpu_custom_call.1} parent=5 // pred_check
        _
      $region10: #{tpu_custom_call.1} parent=5 // pred_check_branch
        %204 = sbr.rel (%p201) target = $region12
      $region11: #{tpu_custom_call.1} parent=5 // pred_region
        %s205 = ssub.s32 %s24, 1
        // Predicated region
        $region13: #{tpu_custom_call.1} parent=11 // pred_check
          %p206 = pneg %p97
        $region14: #{tpu_custom_call.1} parent=11 // pred_check_branch
          %208 = sbr.rel (%p206) target = $region16
        $region15: #{tpu_custom_call.1} parent=11 // pred_region
          %s210 = ssub.s32 1024, 1024
          %211 = vsyncadd [#allocation6], %s210
          %s212 = sshll.u32 [#allocation7], 4
          %s213 = int_to_ptr.vmem [resolvable:$true] %s212
          %218 = dma.hbm_to_vmem [thread:$0]  %s2, 1024, %s213, [#allocation6], 64, 64, 4
        $region16: #{tpu_custom_call.1} parent=11 // pred_fallthru
          _
        // Predicated region
        $region17: #{tpu_custom_call.1} parent=11 // pred_check
          %p219 = pneg %p118
        $region18: #{tpu_custom_call.1} parent=11 // pred_check_branch
          %221 = sbr.rel (%p219) target = $region20
        $region19: #{tpu_custom_call.1} parent=11 // pred_region
          _
        $region20: #{tpu_custom_call.1} parent=11 // pred_fallthru
          _
        // Predicated region
        $region21: #{tpu_custom_call.1} parent=11 // pred_check
          %p222 = pneg %p165
        $region22: #{tpu_custom_call.1} parent=11 // pred_check_branch
          %224 = sbr.rel (%p222) target = $region24
        $region23: #{tpu_custom_call.1} parent=11 // pred_region
          %s226 = ssub.s32 2048, 2048
          %227 = vsyncadd [#allocation9], %s226
          %s228 = sshll.u32 [#allocation10], 4
          %s229 = int_to_ptr.vmem [resolvable:$true] %s228
          %234 = dma.hbm_to_vmem [thread:$0]  %s5, 2048, %s229, [#allocation9], 128, 128, 8
        $region24: #{tpu_custom_call.1} parent=11 // pred_fallthru
          _
      $region12: #{tpu_custom_call.1} parent=5 // pred_fallthru
        _
      %p235 = scmp.lt.s32.totalorder %s24, 2
      // Predicated region
      $region25: #{tpu_custom_call.1} parent=5 // pred_check
        %p236 = pneg %p235
      $region26: #{tpu_custom_call.1} parent=5 // pred_check_branch
        %238 = sbr.rel (%p236) target = $region28
      $region27: #{tpu_custom_call.1} parent=5 // pred_region
        // Predicated region
        $region29: #{tpu_custom_call.1} parent=27 // pred_check
          %p239 = pneg %p44
        $region30: #{tpu_custom_call.1} parent=27 // pred_check_branch
          %241 = sbr.rel (%p239) target = $region32
        $region31: #{tpu_custom_call.1} parent=27 // pred_region
          %s242 = sand.u32 %s34, 1
          %s243 = scalar_lea.sflag [#allocation3], %s242
          %s244 = sand.u32 %s34, 1
          %s245 = smul.addr %s244, 8
          %s246 = scalar_lea.vmem [#allocation2], %s245
          %s248 = ssub.s32 128, 128
          %249 = vsyncadd %s243, %s248
          %s250 = smul.addr %s24, 128
          %s251 = scalar_lea.hbm %s0, %s250
          %s253 = sshll.u32 %s246, 4
          %s254 = int_to_ptr.vmem [resolvable:$true] %s253
          %256 = dma.hbm_to_vmem [thread:$0]  %s251, 128, %s254, %s243
        $region32: #{tpu_custom_call.1} parent=27 // pred_fallthru
          _
        // Predicated region
        $region33: #{tpu_custom_call.1} parent=27 // pred_check
          %p257 = pneg %p70
        $region34: #{tpu_custom_call.1} parent=27 // pred_check_branch
          %259 = sbr.rel (%p257) target = $region36
        $region35: #{tpu_custom_call.1} parent=27 // pred_region
          %s260 = sand.u32 %s24, 1
          %s261 = scalar_lea.sflag [#allocation6], %s260
          %s262 = sand.u32 %s60, 1
          %s263 = smul.addr %s262, 8
          %s264 = scalar_lea.vmem [#allocation5], %s263
          %s266 = ssub.s32 128, 128
          %267 = vsyncadd %s261, %s266
          %s268 = smul.addr %s24, 128
          %s269 = scalar_lea.hbm %s1, %s268
          %s271 = sshll.u32 %s264, 4
          %s272 = int_to_ptr.vmem [resolvable:$true] %s271
          %274 = dma.hbm_to_vmem [thread:$0]  %s269, 128, %s272, %s261
        $region36: #{tpu_custom_call.1} parent=27 // pred_fallthru
          _
        // Predicated region
        $region37: #{tpu_custom_call.1} parent=27 // pred_check
          %p275 = pneg %p138
        $region38: #{tpu_custom_call.1} parent=27 // pred_check_branch
          %277 = sbr.rel (%p275) target = $region40
        $region39: #{tpu_custom_call.1} parent=27 // pred_region
          %s278 = sand.u32 %s24, 1
          %s279 = scalar_lea.sflag [#allocation9], %s278
          %s280 = sand.u32 %s128, 1
          %s281 = smul.addr %s280, 8
          %s282 = scalar_lea.vmem [#allocation8], %s281
          %s284 = ssub.s32 128, 128
          %285 = vsyncadd %s279, %s284
          %s286 = smul.addr %s24, 128
          %s287 = scalar_lea.hbm %s4, %s286
          %s289 = sshll.u32 %s282, 4
          %s290 = int_to_ptr.vmem [resolvable:$true] %s289
          %292 = dma.hbm_to_vmem [thread:$0]  %s287, 128, %s290, %s279
        $region40: #{tpu_custom_call.1} parent=27 // pred_fallthru
          _
      $region28: #{tpu_custom_call.1} parent=5 // pred_fallthru
        _
      %p293 = scmp.le.s32.totalorder 1, %s24
      %p294 = scmp.lt.s32.totalorder %s24, 3
      %p295 = pnand %p293, %p294
      %p296 = pneg %p295
      // Predicated region
      $region41: #{tpu_custom_call.1} parent=5 // pred_check
        _
      $region42: #{tpu_custom_call.1} parent=5 // pred_check_branch
        %298 = sbr.rel (%p295) target = $region44
      $region43: #{tpu_custom_call.1} parent=5 // pred_region
        %s299 = ssub.s32 %s24, 1
        %s300 = sand.u32 %s37, 1
        %s301 = scalar_lea.sflag [#allocation3], %s300
        %s302 = sand.u32 %s37, 1
        %s303 = smul.addr %s302, 8
        %s304 = scalar_lea.vmem [#allocation2], %s303
        // Predicated region
        $region45: #{tpu_custom_call.1} parent=43 // pred_check
          %p305 = pneg %p50
        $region46: #{tpu_custom_call.1} parent=43 // pred_check_branch
          %307 = sbr.rel (%p305) target = $region48
        $region47: #{tpu_custom_call.1} parent=43 // pred_region
          %308 = dma.done %s301, 128
        $region48: #{tpu_custom_call.1} parent=43 // pred_fallthru
          _
        %s309 = sand.u32 %s29, 1
        %s310 = scalar_lea.sflag [#allocation6], %s309
        %s311 = sand.u32 %s63, 1
        %s312 = smul.addr %s311, 8
        %s313 = scalar_lea.vmem [#allocation5], %s312
        // Predicated region
        $region49: #{tpu_custom_call.1} parent=43 // pred_check
          %p314 = pneg %p76
        $region50: #{tpu_custom_call.1} parent=43 // pred_check_branch
          %316 = sbr.rel (%p314) target = $region52
        $region51: #{tpu_custom_call.1} parent=43 // pred_region
          %317 = dma.done %s310, 128
        $region52: #{tpu_custom_call.1} parent=43 // pred_fallthru
          _
        // Predicated region
        $region53: #{tpu_custom_call.1} parent=43 // pred_check
          %p318 = pneg %p97
        $region54: #{tpu_custom_call.1} parent=43 // pred_check_branch
          %320 = sbr.rel (%p318) target = $region56
        $region55: #{tpu_custom_call.1} parent=43 // pred_region
          %321 = dma.done [#allocation6], 1024
        $region56: #{tpu_custom_call.1} parent=43 // pred_fallthru
          _
        %s322 = sand.u32 %s29, 1
        %s323 = scalar_lea.sflag [#allocation9], %s322
        %s324 = sand.u32 %s131, 1
        %s325 = smul.addr %s324, 8
        %s326 = scalar_lea.vmem [#allocation8], %s325
        // Predicated region
        $region57: #{tpu_custom_call.1} parent=43 // pred_check
          %p327 = pneg %p144
        $region58: #{tpu_custom_call.1} parent=43 // pred_check_branch
          %329 = sbr.rel (%p327) target = $region60
        $region59: #{tpu_custom_call.1} parent=43 // pred_region
          %330 = dma.done %s323, 128
        $region60: #{tpu_custom_call.1} parent=43 // pred_fallthru
          _
        // Predicated region
        $region61: #{tpu_custom_call.1} parent=43 // pred_check
          %p331 = pneg %p165
        $region62: #{tpu_custom_call.1} parent=43 // pred_check_branch
          %333 = sbr.rel (%p331) target = $region64
        $region63: #{tpu_custom_call.1} parent=43 // pred_region
          %334 = dma.done [#allocation9], 2048
        $region64: #{tpu_custom_call.1} parent=43 // pred_fallthru
          _
        %s335 = sand.u32 %s37, 1
        %s336 = scalar_lea.sflag [#allocation3], %s335
        %s337 = sand.u32 %s37, 1
        %s338 = smul.addr %s337, 8
        %s339 = scalar_lea.vmem [#allocation2], %s338
        %p340 = pneg %p50
        %p341 = pneg %p47
        %s342 = sand.u32 %s29, 1
        %s343 = scalar_lea.sflag [#allocation6], %s342
        %s344 = sand.u32 %s63, 1
        %s345 = smul.addr %s344, 8
        %s346 = scalar_lea.vmem [#allocation5], %s345
        %p347 = pneg %p76
        %p348 = pneg %p73
        %p349 = pneg %p97
        %p350 = pneg %p94
        %p351 = pneg %p118
        %p352 = pneg %p115
        %s353 = sand.u32 %s29, 1
        %s354 = scalar_lea.sflag [#allocation9], %s353
        %s355 = sand.u32 %s131, 1
        %s356 = smul.addr %s355, 8
        %s357 = scalar_lea.vmem [#allocation8], %s356
        %p358 = pneg %p144
        %p359 = pneg %p141
        %p360 = pneg %p165
        %p361 = pneg %p162
        %p362 = pneg %p191
        %p363 = pneg %p188
        %s364 = sand.u32 %s178, 1
        %s365 = scalar_lea.sflag [#allocation4], %s364
        %s366 = sand.u32 %s178, 1
        %s367 = smul.addr %s366, 8
        %s368 = scalar_lea.vmem [#allocation11], %s367
        %v370 = vld [vmem:[%s304] sm:$0xff]
        %v371 = vld [vmem:[%s313] sm:$0xff]
        %v372 = vmul.f32 %v370, %v371
        %v373 = vpack.c.bf16 %v372, %v372
        %v374 = vld [vmem:[#allocation7] sm:$0xf]
        %v375 = vld [vmem:[#allocation7 + $0x4] sm:$0xf]
        %v376 = vld [vmem:[#allocation7 + $0x8] sm:$0xf]
        %v377 = vld [vmem:[#allocation7 + $0xc] sm:$0xf]
        %v378 = vld [vmem:[#allocation7 + $0x10] sm:$0xf]
        %v379 = vld [vmem:[#allocation7 + $0x14] sm:$0xf]
        %v380 = vld [vmem:[#allocation7 + $0x18] sm:$0xf]
        %v381 = vld [vmem:[#allocation7 + $0x1c] sm:$0xf]
        %v382 = vld [vmem:[#allocation7 + $0x20] sm:$0xf]
        %v383 = vld [vmem:[#allocation7 + $0x24] sm:$0xf]
        %v384 = vld [vmem:[#allocation7 + $0x28] sm:$0xf]
        %v385 = vld [vmem:[#allocation7 + $0x2c] sm:$0xf]
        %v386 = vld [vmem:[#allocation7 + $0x30] sm:$0xf]
        %v387 = vld [vmem:[#allocation7 + $0x34] sm:$0xf]
        %v388 = vld [vmem:[#allocation7 + $0x38] sm:$0xf]
        %v389 = vld [vmem:[#allocation7 + $0x3c] sm:$0xf]
        %v390 = vld [vmem:[%s3] sm:$0x1]
        %v392 = vlaneseq
        %v393 = vshrl.u32 %v392, 7
        %v394 = vsub.s32 0, %v393
        %v395 = vrot.slane %v390, %v394
        %v413 = vunpack.c.l.b16 %v374
        %v414 = vunpack.c.l.b16 %v375
        %v415 = vunpack.c.l.b16 %v376
        %v416 = vunpack.c.l.b16 %v377
        %v417 = vunpack.c.l.b16 %v378
        %v418 = vunpack.c.l.b16 %v379
        %v419 = vunpack.c.l.b16 %v380
        %v420 = vunpack.c.l.b16 %v381
        %v421 = vunpack.c.l.b16 %v382
        %v422 = vunpack.c.l.b16 %v383
        %v423 = vunpack.c.l.b16 %v384
        %v424 = vunpack.c.l.b16 %v385
        %v425 = vunpack.c.l.b16 %v386
        %v426 = vunpack.c.l.b16 %v387
        %v427 = vunpack.c.l.b16 %v388
        %v428 = vunpack.c.l.b16 %v389
        %v429 = vpack.c.b16 %v414, %v413
        %v430 = vpack.c.b16 %v416, %v415
        %v431 = vpack.c.b16 %v418, %v417
        %v432 = vpack.c.b16 %v420, %v419
        %v433 = vpack.c.b16 %v422, %v421
        %v434 = vpack.c.b16 %v424, %v423
        %v435 = vpack.c.b16 %v426, %v425
        %v436 = vpack.c.b16 %v428, %v427
        %445 = vmatprep.subr.bf16.mxu0 0
        %446 = vmatpush1.bf16.msra.mxu0 %v436
        %447 = vmatprep.subr.bf16.mxu0 0
        %448 = vmatpush1.bf16.msra.mxu0 %v435
        %449 = vmatprep.subr.bf16.mxu0 0
        %450 = vmatpush1.bf16.msra.mxu0 %v434
        %451 = vmatprep.subr.bf16.mxu0 0
        %452 = vmatpush1.bf16.msra.mxu0 %v433
        %453 = vmatprep.subr.bf16.mxu0 0
        %454 = vmatpush1.bf16.msra.mxu0 %v432
        %455 = vmatprep.subr.bf16.mxu0 0
        %456 = vmatpush1.bf16.msra.mxu0 %v431
        %457 = vmatprep.subr.bf16.mxu0 0
        %458 = vmatpush1.bf16.msra.mxu0 %v430
        %459 = vmatprep.subr.bf16.mxu0 0
        %460 = vmatpush1.bf16.msra.mxu0 %v429
        %461 = vmatprep.subr.bf16.mxu0 0
        %462 = vmatpush2.bf16.msra.mxu0 0
        %463 = vmatprep.subr.bf16.mxu0 0
        %464 = vmatpush2.bf16.msra.mxu0 0
        %465 = vmatprep.subr.bf16.mxu0 0
        %466 = vmatpush2.bf16.msra.mxu0 0
        %467 = vmatprep.subr.bf16.mxu0 0
        %468 = vmatpush2.bf16.msra.mxu0 0
        %469 = vmatprep.subr.bf16.mxu0 0
        %470 = vmatpush2.bf16.msra.mxu0 0
        %471 = vmatprep.subr.bf16.mxu0 0
        %472 = vmatpush2.bf16.msra.mxu0 0
        %473 = vmatprep.subr.bf16.mxu0 0
        %474 = vmatpush2.bf16.msra.mxu0 0
        %475 = vmatprep.subr.bf16.mxu0 0
        %476 = vmatpush2.bf16.msra.mxu0 0
        %477 = vmatprep.mubr.bf16.mxu0 0
        %478 = vmatmul.mubr.bf16.gmra.mxu0 %v373
        %v479 = vpop.f32.mrf.mxu0
        %v480 = vadd.f32 %v395, %v479
        %v481 = vpop.f32.mrf.mxu0
        %v482 = vpop.f32.mrf.mxu0
        %v483 = vpop.f32.mrf.mxu0
        %484 = vdwg.mxu0
        %v485 = vxor.u32 %v480, 2147483648
        %v486 = vmul.f32 %v485, 1.442695
        %v487 = vpow.pop %v486
        %v488 = vadd.f32 %v487, 1.0
        %v489 = vrcp.pop %v488
        %v490 = vmul.f32 1.0, %v489
        %v491 = vld [vmem:[%s326] sm:$0xff]
        %v492 = vadd.f32 %v490, %v491
        %v493 = vmul.f32 %v492, 1.442695
        %v494 = vpow.pop %v493
        %v495 = vld [vmem:[#allocation10] sm:$0xff]
        %v496 = vld [vmem:[#allocation10 + $0x8] sm:$0xff]
        %v497 = vld [vmem:[#allocation10 + $0x10] sm:$0xff]
        %v498 = vld [vmem:[#allocation10 + $0x18] sm:$0xff]
        %v499 = vld [vmem:[#allocation10 + $0x20] sm:$0xff]
        %v500 = vld [vmem:[#allocation10 + $0x28] sm:$0xff]
        %v501 = vld [vmem:[#allocation10 + $0x30] sm:$0xff]
        %v502 = vld [vmem:[#allocation10 + $0x38] sm:$0xff]
        %v503 = vld [vmem:[#allocation10 + $0x40] sm:$0xff]
        %v504 = vld [vmem:[#allocation10 + $0x48] sm:$0xff]
        %v505 = vld [vmem:[#allocation10 + $0x50] sm:$0xff]
        %v506 = vld [vmem:[#allocation10 + $0x58] sm:$0xff]
        %v507 = vld [vmem:[#allocation10 + $0x60] sm:$0xff]
        %v508 = vld [vmem:[#allocation10 + $0x68] sm:$0xff]
        %v509 = vld [vmem:[#allocation10 + $0x70] sm:$0xff]
        %v510 = vld [vmem:[#allocation10 + $0x78] sm:$0xff]
        %511 = vmatprep.subr.mxu0 0.0
        %512 = vmatpush1.msra.mxu0 %v510
        %513 = vmatprep.subr.mxu0 0.0
        %514 = vmatpush1.msra.mxu0 %v509
        %515 = vmatprep.subr.mxu0 0.0
        %516 = vmatpush1.msra.mxu0 %v508
        %517 = vmatprep.subr.mxu0 0.0
        %518 = vmatpush1.msra.mxu0 %v507
        %519 = vmatprep.subr.mxu0 0.0
        %520 = vmatpush1.msra.mxu0 %v506
        %521 = vmatprep.subr.mxu0 0.0
        %522 = vmatpush1.msra.mxu0 %v505
        %523 = vmatprep.subr.mxu0 0.0
        %524 = vmatpush1.msra.mxu0 %v504
        %525 = vmatprep.subr.mxu0 0.0
        %526 = vmatpush1.msra.mxu0 %v503
        %527 = vmatprep.subr.mxu0 0.0
        %528 = vmatpush1.msra.mxu0 %v502
        %529 = vmatprep.subr.mxu0 0.0
        %530 = vmatpush1.msra.mxu0 %v501
        %531 = vmatprep.subr.mxu0 0.0
        %532 = vmatpush1.msra.mxu0 %v500
        %533 = vmatprep.subr.mxu0 0.0
        %534 = vmatpush1.msra.mxu0 %v499
        %535 = vmatprep.subr.mxu0 0.0
        %536 = vmatpush1.msra.mxu0 %v498
        %537 = vmatprep.subr.mxu0 0.0
        %538 = vmatpush1.msra.mxu0 %v497
        %539 = vmatprep.subr.mxu0 0.0
        %540 = vmatpush1.msra.mxu0 %v496
        %541 = vmatprep.subr.mxu0 0.0
        %542 = vmatpush1.msra.mxu0 %v495
        %543 = vmatprep.subr.mxu0 0.0
        %544 = vmatpush2.msra.mxu0 0.0
        %545 = vmatprep.subr.mxu0 0.0
        %546 = vmatpush2.msra.mxu0 0.0
        %547 = vmatprep.subr.mxu0 0.0
        %548 = vmatpush2.msra.mxu0 0.0
        %549 = vmatprep.subr.mxu0 0.0
        %550 = vmatpush2.msra.mxu0 0.0
        %551 = vmatprep.subr.mxu0 0.0
        %552 = vmatpush2.msra.mxu0 0.0
        %553 = vmatprep.subr.mxu0 0.0
        %554 = vmatpush2.msra.mxu0 0.0
        %555 = vmatprep.subr.mxu0 0.0
        %556 = vmatpush2.msra.mxu0 0.0
        %557 = vmatprep.subr.mxu0 0.0
        %558 = vmatpush2.msra.mxu0 0.0
        %559 = vmatprep.subr.mxu0 0.0
        %560 = vmatpush2.msra.mxu0 0.0
        %561 = vmatprep.subr.mxu0 0.0
        %562 = vmatpush2.msra.mxu0 0.0
        %563 = vmatprep.subr.mxu0 0.0
        %564 = vmatpush2.msra.mxu0 0.0
        %565 = vmatprep.subr.mxu0 0.0
        %566 = vmatpush2.msra.mxu0 0.0
        %567 = vmatprep.subr.mxu0 0.0
        %568 = vmatpush2.msra.mxu0 0.0
        %569 = vmatprep.subr.mxu0 0.0
        %570 = vmatpush2.msra.mxu0 0.0
        %571 = vmatprep.subr.mxu0 0.0
        %572 = vmatpush2.msra.mxu0 0.0
        %573 = vmatprep.subr.mxu0 0.0
        %574 = vmatpush2.msra.mxu0 0.0
        %575 = vmatprep.mubr.f32.mxu0 0.0
        %576 = vmatmul.mubr.f32.gmra.mxu0 %v494
        %v577 = vpop.f32.mrf.mxu0
        %v578 = vadd.f32 0.0, %v577
        %v579 = vpop.f32.mrf.mxu0
        %580 = vdwg.mxu0
        %v581 = vrcp.pop %v578
        %v582 = vmul.f32 %v494, %v581
        %583 = vst [vmem:[%s368] sm:$0xff] %v582
        %s584 = sand.u32 %s178, 1
        %s585 = scalar_lea.sflag [#allocation4], %s584
        %s586 = sand.u32 %s178, 1
        %s587 = smul.addr %s586, 8
        %s588 = scalar_lea.vmem [#allocation11], %s587
        // Predicated region
        $region65: #{tpu_custom_call.1} parent=43 // pred_check
          %p589 = pneg %p188
        $region66: #{tpu_custom_call.1} parent=43 // pred_check_branch
          %591 = sbr.rel (%p589) target = $region68
        $region67: #{tpu_custom_call.1} parent=43 // pred_region
          %s593 = ssub.s32 128, 128
          %594 = vsyncadd %s585, %s593
          %s595 = smul.addr %s29, 128
          %s596 = scalar_lea.hbm %s6, %s595
          %s598 = sshll.u32 %s588, 4
          %s599 = int_to_ptr.vmem [resolvable:$true] %s598
          %601 = dma.vmem_to_hbm [thread:$0]  %s599, 128, %s596, %s585
        $region68: #{tpu_custom_call.1} parent=43 // pred_fallthru
          _
      $region44: #{tpu_custom_call.1} parent=5 // pred_fallthru
        _
      %p602 = scmp.le.s32.totalorder 2, %s24
      // Predicated region
      $region69: #{tpu_custom_call.1} parent=5 // pred_check
        %p603 = pneg %p602
      $region70: #{tpu_custom_call.1} parent=5 // pred_check_branch
        %605 = sbr.rel (%p603) target = $region72
      $region71: #{tpu_custom_call.1} parent=5 // pred_region
        %s606 = ssub.s32 %s24, 2
        // Predicated region
        $region73: #{tpu_custom_call.1} parent=71 // pred_check
          %p607 = pneg %p194
        $region74: #{tpu_custom_call.1} parent=71 // pred_check_branch
          %609 = sbr.rel (%p607) target = $region76
        $region75: #{tpu_custom_call.1} parent=71 // pred_region
          %s610 = sand.u32 %s179, 1
          %s611 = scalar_lea.sflag [#allocation4], %s610
          %s612 = sand.u32 %s179, 1
          %s613 = smul.addr %s612, 8
          %s614 = scalar_lea.vmem [#allocation11], %s613
          %615 = dma.done %s611, 128
        $region76: #{tpu_custom_call.1} parent=71 // pred_fallthru
          _
      $region72: #{tpu_custom_call.1} parent=5 // pred_fallthru
        _
    $region6: #{tpu_custom_call.1} parent=1 // loop_footer
      %s28 = sadd.s32 1, %s24
    $region7: #{tpu_custom_call.1} parent=1 // loop_footer_branch
      %23 = sbr.rel target = $region3
    $region8: #{tpu_custom_call.1} parent=1 // loop_exit
      _
    %616 = vsyncpa [#allocation3], 1
    %s617 = scalar_lea.sflag [#allocation3], 1
    %618 = vsyncpa %s617, 1
    %619 = vsyncpa [#allocation6], 1
    %s620 = scalar_lea.sflag [#allocation6], 1
    %621 = vsyncpa %s620, 1
    %622 = vsyncpa [#allocation9], 1
    %s623 = scalar_lea.sflag [#allocation9], 1
    %624 = vsyncpa %s623, 1
    %625 = vsyncpa [#allocation4], 1
    %s626 = scalar_lea.sflag [#allocation4], 1
    %627 = vsyncpa %s626, 1

</llo_original>
